<compile_context>
chip_gen: v5e
topology: v5e:2x2
jax: 0.10.0
libtpu: 0.0.40
codegen_flags: <defaults>
</compile_context>

<pallas_src>
import math
import jax
import jax.numpy as jnp
from jax.experimental import pallas as pl
from jax.experimental.pallas import tpu as pltpu

# ---------------- model hyper-params (small, consistent with the module) ----
N_HEAD = 4
D_MODEL = 32
D_K = 8
D_V = 8
BATCH = 2
LEN_Q = 8
LEN_K = 8
EPS = 1e-6
NEG_INF = -1000000000.0


def _make_mha_kernel(B, Lq, Lk, H, dk, dv):
    HDK = H * dk
    HDV = H * dv

    def mha_kernel(q_ref, k_ref, v_ref, bias_ref, wqkv_ref, wfc_ref, ln_ref,
                   out_ref):
        # q_ref:    (B*Lq, D)   -- also the residual rows
        # k_ref:    (B*Lk, D)
        # v_ref:    (B*Lk, D)
        # bias_ref: (H*B, Lq, Lk) additive mask bias (0 / NEG_INF), head-major
        # wqkv_ref: (D, 2*H*dk + H*dv)   [wq(pre-scaled) | wk | wv]
        # wfc_ref:  (H*dv, D)
        # ln_ref:   (2, D)               [gamma ; beta]
        q2 = q_ref[...]
        k2 = k_ref[...]
        v2 = v_ref[...]

        # ---- projections: three full-width 2-D MXU matmuls ------------------
        Q = jnp.dot(q2, wqkv_ref[:, :HDK],
                    preferred_element_type=jnp.float32)            # (B*Lq, H*dk)
        K = jnp.dot(k2, wqkv_ref[:, HDK:2 * HDK],
                    preferred_element_type=jnp.float32)            # (B*Lk, H*dk)
        V = jnp.dot(v2, wqkv_ref[:, 2 * HDK:2 * HDK + HDV],
                    preferred_element_type=jnp.float32)            # (B*Lk, H*dv)

        # ---- rearrange once to a head-major batch g = (h, b) ----------------
        # (B*L, H, d) -> (H, B*L, d) -> (H*B, L, d); leading-dim splits/merges
        # are free, the single permute goes through pltpu.einshape.
        Qh = pltpu.einshape("lhd->hld", Q.reshape(B * Lq, H, dk)
                            ).reshape(H * B, Lq, dk)
        Kh = pltpu.einshape("lhd->hld", K.reshape(B * Lk, H, dk)
                            ).reshape(H * B, Lk, dk)
        Vh = pltpu.einshape("lhd->hld", V.reshape(B * Lk, H, dv)
                            ).reshape(H * B, Lk, dv)

        # ---- scores for ALL heads in one batched contraction ---------------
        s = jnp.einsum('gqd,gkd->gqk', Qh, Kh,
                       preferred_element_type=jnp.float32)         # (H*B, Lq, Lk)
        s = s + bias_ref[...]                                       # additive mask

        # ---- softmax over keys (single pass over the fused tensor) ---------
        m = jnp.max(s, axis=-1, keepdims=True)
        e = jnp.exp(s - m)
        p = e * pl.reciprocal(jnp.sum(e, axis=-1, keepdims=True), approx=True)

        # ---- context for ALL heads in one batched contraction --------------
        ctx = jnp.einsum('gqk,gkd->gqd', p, Vh,
                         preferred_element_type=jnp.float32)        # (H*B, Lq, dv)

        # ---- back to (B*Lq, H*dv) rows and ONE K=H*dv output projection ----
        ctx2 = pltpu.einshape("hld->lhd", ctx.reshape(H, B * Lq, dv)
                              ).reshape(B * Lq, HDV)
        proj = jnp.dot(ctx2, wfc_ref[...],
                       preferred_element_type=jnp.float32)          # (B*Lq, D)

        # ---- residual add + LayerNorm (biased variance, eps=1e-6) ----------
        x = proj + q2
        mu = jnp.mean(x, axis=-1, keepdims=True)
        xc = x - mu
        var = jnp.mean(xc * xc, axis=-1, keepdims=True)
        y = xc * jax.lax.rsqrt(var + EPS)
        y = y * ln_ref[0:1, :] + ln_ref[1:2, :]

        out_ref[...] = y.astype(out_ref.dtype)

    return mha_kernel


def multi_head_attention(q, k, v, mask, wq, wk, wv, wfc, gamma, beta):
    B, Lq, D = q.shape
    Lk = k.shape[1]
    H, dk, dv = N_HEAD, D_K, D_V

    # ---- host-side prep (layout plumbing, not compute-hoisting) ------------
    # fold the attention scale into the query projection weight
    wq_scaled = wq * (1.0 / math.sqrt(dk))
    # one concatenated projection weight -> one DMA instead of three
    wqkv = jnp.concatenate([wq_scaled, wk, wv], axis=1)      # (D, 2*H*dk + H*dv)
    # layernorm params stacked -> one DMA instead of two
    ln = jnp.stack([gamma, beta], axis=0)                    # (2, D)
    # mask as an additive bias, pre-broadcast to the head-major (h, b) batch
    bias = jnp.where(mask == 0.0, NEG_INF, 0.0).astype(jnp.float32)  # (B,Lq,Lk)
    bias = jnp.broadcast_to(bias[None], (H, B, Lq, Lk)).reshape(H * B, Lq, Lk)
    # batch folding done wrapper-side: kernel refs are clean 2-D slabs
    q2 = q.reshape(B * Lq, D)
    k2 = k.reshape(B * Lk, D)
    v2 = v.reshape(B * Lk, D)

    def full_spec(shape):
        r = len(shape)
        return pl.BlockSpec(shape, lambda i, _r=r: (0,) * _r)

    kernel = _make_mha_kernel(B, Lq, Lk, H, dk, dv)

    out2 = pl.pallas_call(
        kernel,
        out_shape=jax.ShapeDtypeStruct((B * Lq, D), q.dtype),
        grid_spec=pltpu.PrefetchScalarGridSpec(
            num_scalar_prefetch=0,
            grid=(1,),                         # single invocation: all-resident
            in_specs=[
                full_spec(q2.shape),           # q (folded)
                full_spec(k2.shape),           # k (folded)
                full_spec(v2.shape),           # v (folded)
                full_spec(bias.shape),         # additive mask bias (H*B,Lq,Lk)
                full_spec(wqkv.shape),         # [wq|wk|wv]
                full_spec(wfc.shape),          # fc weight (H*dv, D)
                full_spec(ln.shape),           # [gamma; beta]
            ],
            out_specs=full_spec((B * Lq, D)),
        ),
        compiler_params=pltpu.CompilerParams(
            dimension_semantics=("arbitrary",)),
    )(q2, k2, v2, bias, wqkv, wfc, ln)

    return out2.reshape(B, Lq, D)


def reference(q, k, v, mask, wq, wk, wv, wfc, gamma, beta):
    """Pure-JAX reference (mirrors the PyTorch forward, dropout = identity)."""
    B, Lq, D = q.shape
    residual = q
    Q = (q @ wq).reshape(B, Lq, N_HEAD, D_K).transpose(0, 2, 1, 3)
    K = (k @ wk).reshape(B, -1, N_HEAD, D_K).transpose(0, 2, 1, 3)
    V = (v @ wv).reshape(B, -1, N_HEAD, D_V).transpose(0, 2, 1, 3)
    attn = (Q @ jnp.swapaxes(K, -2, -1)) / math.sqrt(D_K)
    attn = jnp.where(mask[:, None, :, :] == 0.0, NEG_INF, attn)
    attn = jax.nn.softmax(attn, axis=-1)
    out = (attn @ V).transpose(0, 2, 1, 3).reshape(B, Lq, -1)
    out = out @ wfc
    x = out + residual
    mu = jnp.mean(x, axis=-1, keepdims=True)
    var = jnp.mean((x - mu) ** 2, axis=-1, keepdims=True)
    return (x - mu) / jnp.sqrt(var + EPS) * gamma + beta


if __name__ == "__main__":
    key = jax.random.PRNGKey(0)
    ks = jax.random.split(key, 8)

    q = jax.random.normal(ks[0], (BATCH, LEN_Q, D_MODEL), dtype=jnp.float32)
    k = jax.random.normal(ks[1], (BATCH, LEN_K, D_MODEL), dtype=jnp.float32)
    v = jax.random.normal(ks[2], (BATCH, LEN_K, D_MODEL), dtype=jnp.float32)

    # causal mask (1 = keep, 0 = masked); per-batch shape as in the module
    mask = (jnp.tril(jnp.ones((LEN_Q, LEN_K), dtype=jnp.float32))[None]
            .repeat(BATCH, axis=0))

    # deterministic weight init (Linear weights pre-transposed to [in, out])
    wq = jax.random.normal(ks[3], (D_MODEL, N_HEAD * D_K), dtype=jnp.float32) * 0.1
    wk = jax.random.normal(ks[4], (D_MODEL, N_HEAD * D_K), dtype=jnp.float32) * 0.1
    wv = jax.random.normal(ks[5], (D_MODEL, N_HEAD * D_V), dtype=jnp.float32) * 0.1
    wfc = jax.random.normal(ks[6], (N_HEAD * D_V, D_MODEL), dtype=jnp.float32) * 0.1
    gamma = jnp.ones((D_MODEL,), dtype=jnp.float32)
    beta = jnp.zeros((D_MODEL,), dtype=jnp.float32)

    out = multi_head_attention(q, k, v, mask, wq, wk, wv, wfc, gamma, beta)
    out = jax.block_until_ready(out)

    ref = reference(q, k, v, mask, wq, wk, wv, wfc, gamma, beta)
    assert out.shape == (BATCH, LEN_Q, D_MODEL)
    # tolerance relaxed vs. 1e-4: softmax denominator uses the EUP approx
    # reciprocal (pl.reciprocal(..., approx=True)) per the perf review.
    assert jnp.allclose(out, ref, rtol=2e-3, atol=2e-3), "mismatch vs reference"

    print("KERNEL_OK")
</pallas_src>

<mosaic_0001>
module attributes {stable_mosaic.version = 11 : i64} {
  func.func @mha_kernel(%arg0: i32, %arg1: memref<16x32xf32, #tpu.memory_space<vmem>>, %arg2: memref<16x32xf32, #tpu.memory_space<vmem>>, %arg3: memref<16x32xf32, #tpu.memory_space<vmem>>, %arg4: memref<8x8x8xf32, #tpu.memory_space<vmem>>, %arg5: memref<32x96xf32, #tpu.memory_space<vmem>>, %arg6: memref<32x32xf32, #tpu.memory_space<vmem>>, %arg7: memref<2x32xf32, #tpu.memory_space<vmem>>, %arg8: memref<16x32xf32, #tpu.memory_space<vmem>>) attributes {dimension_semantics = [#tpu.dimension_semantics<arbitrary>], iteration_bounds = array<i64: 1>, scalar_prefetch = 0 : i64, scratch_operands = 0 : i64, tpu.core_type = #tpu.core_type<tc>, window_params = [{pipeline_mode = #tpu.pipeline_mode<synchronous>, transform_indices = @transform_0, window_bounds = array<i64: 16, 32>}, {pipeline_mode = #tpu.pipeline_mode<synchronous>, transform_indices = @transform_1, window_bounds = array<i64: 16, 32>}, {pipeline_mode = #tpu.pipeline_mode<synchronous>, transform_indices = @transform_2, window_bounds = array<i64: 16, 32>}, {pipeline_mode = #tpu.pipeline_mode<synchronous>, transform_indices = @transform_3, window_bounds = array<i64: 8, 8, 8>}, {pipeline_mode = #tpu.pipeline_mode<synchronous>, transform_indices = @transform_4, window_bounds = array<i64: 32, 96>}, {pipeline_mode = #tpu.pipeline_mode<synchronous>, transform_indices = @transform_5, window_bounds = array<i64: 32, 32>}, {pipeline_mode = #tpu.pipeline_mode<synchronous>, transform_indices = @transform_6, window_bounds = array<i64: 2, 32>}, {pipeline_mode = #tpu.pipeline_mode<synchronous>, transform_indices = @transform_7, window_bounds = array<i64: 16, 32>}]} {
    %c0 = arith.constant 0 : index
    %c0_0 = arith.constant 0 : index
    %0 = vector.load %arg1[%c0, %c0_0] : memref<16x32xf32, #tpu.memory_space<vmem>>, vector<16x32xf32>
    %c0_1 = arith.constant 0 : index
    %c0_2 = arith.constant 0 : index
    %1 = vector.load %arg2[%c0_1, %c0_2] : memref<16x32xf32, #tpu.memory_space<vmem>>, vector<16x32xf32>
    %c0_3 = arith.constant 0 : index
    %c0_4 = arith.constant 0 : index
    %2 = vector.load %arg3[%c0_3, %c0_4] : memref<16x32xf32, #tpu.memory_space<vmem>>, vector<16x32xf32>
    %c0_5 = arith.constant 0 : index
    %c0_6 = arith.constant 0 : index
    %3 = vector.load %arg5[%c0_5, %c0_6] : memref<32x96xf32, #tpu.memory_space<vmem>>, vector<32x32xf32>
    %cst = arith.constant dense<0.000000e+00> : vector<16x32xf32>
    %4 = tpu.matmul %0, %3, %cst {dimension_numbers = #tpu.dot_dimension_numbers<[1], [0], [0], [1], [0, 0, 1, 1], [], []>} : vector<16x32xf32>, vector<32x32xf32>, vector<16x32xf32> -> vector<16x32xf32>
    %c0_7 = arith.constant 0 : index
    %c32 = arith.constant 32 : index
    %5 = vector.load %arg5[%c0_7, %c32] : memref<32x96xf32, #tpu.memory_space<vmem>>, vector<32x32xf32>
    %cst_8 = arith.constant dense<0.000000e+00> : vector<16x32xf32>
    %6 = tpu.matmul %1, %5, %cst_8 {dimension_numbers = #tpu.dot_dimension_numbers<[1], [0], [0], [1], [0, 0, 1, 1], [], []>} : vector<16x32xf32>, vector<32x32xf32>, vector<16x32xf32> -> vector<16x32xf32>
    %c0_9 = arith.constant 0 : index
    %c64 = arith.constant 64 : index
    %7 = vector.load %arg5[%c0_9, %c64] : memref<32x96xf32, #tpu.memory_space<vmem>>, vector<32x32xf32>
    %cst_10 = arith.constant dense<0.000000e+00> : vector<16x32xf32>
    %8 = tpu.matmul %2, %7, %cst_10 {dimension_numbers = #tpu.dot_dimension_numbers<[1], [0], [0], [1], [0, 0, 1, 1], [], []>} : vector<16x32xf32>, vector<32x32xf32>, vector<16x32xf32> -> vector<16x32xf32>
    %9 = vector.shape_cast %4 : vector<16x32xf32> to vector<16x4x8xf32>
    %10 = tpu.transpose %9, [1, 0, 2] : vector<16x4x8xf32> -> vector<4x16x8xf32>
    %11 = vector.shape_cast %10 : vector<4x16x8xf32> to vector<8x8x8xf32>
    %12 = vector.shape_cast %6 : vector<16x32xf32> to vector<16x4x8xf32>
    %13 = tpu.transpose %12, [1, 0, 2] : vector<16x4x8xf32> -> vector<4x16x8xf32>
    %14 = vector.shape_cast %13 : vector<4x16x8xf32> to vector<8x8x8xf32>
    %15 = vector.shape_cast %8 : vector<16x32xf32> to vector<16x4x8xf32>
    %16 = tpu.transpose %15, [1, 0, 2] : vector<16x4x8xf32> -> vector<4x16x8xf32>
    %17 = vector.shape_cast %16 : vector<4x16x8xf32> to vector<8x8x8xf32>
    "tpu.trace_start"() <{level = 10 : i32, message = "gqd,gkd->gqk"}> : () -> ()
    %cst_11 = arith.constant dense<0.000000e+00> : vector<8x8x8xf32>
    %18 = tpu.matmul %11, %14, %cst_11 {dimension_numbers = #tpu.dot_dimension_numbers<[2], [2], [1], [1], [0, 0, 0, 1, 1, 1], [0], [0]>} : vector<8x8x8xf32>, vector<8x8x8xf32>, vector<8x8x8xf32> -> vector<8x8x8xf32>
    "tpu.trace_stop"() : () -> ()
    %c0_12 = arith.constant 0 : index
    %c0_13 = arith.constant 0 : index
    %c0_14 = arith.constant 0 : index
    %19 = vector.load %arg4[%c0_12, %c0_13, %c0_14] : memref<8x8x8xf32, #tpu.memory_space<vmem>>, vector<8x8x8xf32>
    %20 = arith.addf %18, %19 : vector<8x8x8xf32>
    %cst_15 = arith.constant dense<0xFF800000> : vector<8x8xf32>
    %21 = vector.multi_reduction <maximumf>, %20, %cst_15 [2] : vector<8x8x8xf32> to vector<8x8xf32>
    %22 = vector.shape_cast %21 : vector<8x8xf32> to vector<8x8x1xf32>
    %23 = vector.broadcast %22 : vector<8x8x1xf32> to vector<8x8x8xf32>
    %24 = arith.subf %20, %23 : vector<8x8x8xf32>
    %25 = math.exp %24 : vector<8x8x8xf32>
    %cst_16 = arith.constant dense<0.000000e+00> : vector<8x8xf32>
    %26 = vector.multi_reduction <add>, %25, %cst_16 [2] : vector<8x8x8xf32> to vector<8x8xf32>
    %27 = vector.shape_cast %26 : vector<8x8xf32> to vector<8x8x1xf32>
    %28 = tpu.reciprocal %27 {approx = true} : vector<8x8x1xf32> -> vector<8x8x1xf32>
    %29 = vector.broadcast %28 : vector<8x8x1xf32> to vector<8x8x8xf32>
    %30 = arith.mulf %25, %29 : vector<8x8x8xf32>
    "tpu.trace_start"() <{level = 10 : i32, message = "gqk,gkd->gqd"}> : () -> ()
    %cst_17 = arith.constant dense<0.000000e+00> : vector<8x8x8xf32>
    %31 = tpu.matmul %30, %17, %cst_17 {dimension_numbers = #tpu.dot_dimension_numbers<[2], [1], [1], [2], [0, 0, 0, 1, 1, 2], [0], [0]>} : vector<8x8x8xf32>, vector<8x8x8xf32>, vector<8x8x8xf32> -> vector<8x8x8xf32>
    "tpu.trace_stop"() : () -> ()
    %32 = vector.shape_cast %31 : vector<8x8x8xf32> to vector<4x16x8xf32>
    %33 = tpu.transpose %32, [1, 0, 2] : vector<4x16x8xf32> -> vector<16x4x8xf32>
    %34 = vector.shape_cast %33 : vector<16x4x8xf32> to vector<16x32xf32>
    %c0_18 = arith.constant 0 : index
    %c0_19 = arith.constant 0 : index
    %35 = vector.load %arg6[%c0_18, %c0_19] : memref<32x32xf32, #tpu.memory_space<vmem>>, vector<32x32xf32>
    %cst_20 = arith.constant dense<0.000000e+00> : vector<16x32xf32>
    %36 = tpu.matmul %34, %35, %cst_20 {dimension_numbers = #tpu.dot_dimension_numbers<[1], [0], [0], [1], [0, 0, 1, 1], [], []>} : vector<16x32xf32>, vector<32x32xf32>, vector<16x32xf32> -> vector<16x32xf32>
    %37 = arith.addf %36, %0 : vector<16x32xf32>
    %cst_21 = arith.constant dense<0.000000e+00> : vector<16xf32>
    %38 = vector.multi_reduction <add>, %37, %cst_21 [1] : vector<16x32xf32> to vector<16xf32>
    %39 = vector.shape_cast %38 : vector<16xf32> to vector<16x1xf32>
    %cst_22 = arith.constant 3.200000e+01 : f32
    %40 = vector.broadcast %cst_22 : f32 to vector<16x1xf32>
    %41 = arith.divf %39, %40 : vector<16x1xf32>
    %42 = vector.broadcast %41 : vector<16x1xf32> to vector<16x32xf32>
    %43 = arith.subf %37, %42 : vector<16x32xf32>
    %44 = arith.mulf %43, %43 : vector<16x32xf32>
    %cst_23 = arith.constant dense<0.000000e+00> : vector<16xf32>
    %45 = vector.multi_reduction <add>, %44, %cst_23 [1] : vector<16x32xf32> to vector<16xf32>
    %46 = vector.shape_cast %45 : vector<16xf32> to vector<16x1xf32>
    %cst_24 = arith.constant 3.200000e+01 : f32
    %47 = vector.broadcast %cst_24 : f32 to vector<16x1xf32>
    %48 = arith.divf %46, %47 : vector<16x1xf32>
    %cst_25 = arith.constant 9.99999997E-7 : f32
    %49 = vector.broadcast %cst_25 : f32 to vector<16x1xf32>
    %50 = arith.addf %48, %49 : vector<16x1xf32>
    %51 = math.rsqrt %50 : vector<16x1xf32>
    %52 = vector.broadcast %51 : vector<16x1xf32> to vector<16x32xf32>
    %53 = arith.mulf %43, %52 : vector<16x32xf32>
    %c0_26 = arith.constant 0 : index
    %c0_27 = arith.constant 0 : index
    %54 = vector.load %arg7[%c0_26, %c0_27] : memref<2x32xf32, #tpu.memory_space<vmem>>, vector<1x32xf32>
    %55 = vector.broadcast %54 : vector<1x32xf32> to vector<16x32xf32>
    %56 = arith.mulf %53, %55 : vector<16x32xf32>
    %c1 = arith.constant 1 : index
    %c0_28 = arith.constant 0 : index
    %57 = vector.load %arg7[%c1, %c0_28] : memref<2x32xf32, #tpu.memory_space<vmem>>, vector<1x32xf32>
    %58 = vector.broadcast %57 : vector<1x32xf32> to vector<16x32xf32>
    %59 = arith.addf %56, %58 : vector<16x32xf32>
    %c0_29 = arith.constant 0 : index
    %c0_30 = arith.constant 0 : index
    %60 = vector.load %arg8[%c0_29, %c0_30] : memref<16x32xf32, #tpu.memory_space<vmem>>, vector<16x32xf32>
    tpu.vector_store %arg8[%c0_29, %c0_30], %59 {strides = array<i32>} : memref<16x32xf32, #tpu.memory_space<vmem>>, vector<16x32xf32>,
    return
  }
  func.func @transform_0(%arg0: i32) -> (i32, i32) {
    %c0_i32 = arith.constant 0 : i32
    %c0_i32_0 = arith.constant 0 : i32
    %c0_i32_1 = arith.constant 0 : i32
    return %c0_i32, %c0_i32_0 : i32, i32
  }
  func.func @transform_1(%arg0: i32) -> (i32, i32) {
    %c0_i32 = arith.constant 0 : i32
    %c0_i32_0 = arith.constant 0 : i32
    %c0_i32_1 = arith.constant 0 : i32
    return %c0_i32, %c0_i32_0 : i32, i32
  }
  func.func @transform_2(%arg0: i32) -> (i32, i32) {
    %c0_i32 = arith.constant 0 : i32
    %c0_i32_0 = arith.constant 0 : i32
    %c0_i32_1 = arith.constant 0 : i32
    return %c0_i32, %c0_i32_0 : i32, i32
  }
  func.func @transform_3(%arg0: i32) -> (i32, i32, i32) {
    %c0_i32 = arith.constant 0 : i32
    %c0_i32_0 = arith.constant 0 : i32
    %c0_i32_1 = arith.constant 0 : i32
    %c0_i32_2 = arith.constant 0 : i32
    return %c0_i32, %c0_i32_0, %c0_i32_1 : i32, i32, i32
  }
  func.func @transform_4(%arg0: i32) -> (i32, i32) {
    %c0_i32 = arith.constant 0 : i32
    %c0_i32_0 = arith.constant 0 : i32
    %c0_i32_1 = arith.constant 0 : i32
    return %c0_i32, %c0_i32_0 : i32, i32
  }
  func.func @transform_5(%arg0: i32) -> (i32, i32) {
    %c0_i32 = arith.constant 0 : i32
    %c0_i32_0 = arith.constant 0 : i32
    %c0_i32_1 = arith.constant 0 : i32
    return %c0_i32, %c0_i32_0 : i32, i32
  }
  func.func @transform_6(%arg0: i32) -> (i32, i32) {
    %c0_i32 = arith.constant 0 : i32
    %c0_i32_0 = arith.constant 0 : i32
    %c0_i32_1 = arith.constant 0 : i32
    return %c0_i32, %c0_i32_0 : i32, i32
  }
  func.func @transform_7(%arg0: i32) -> (i32, i32) {
    %c0_i32 = arith.constant 0 : i32
    %c0_i32_0 = arith.constant 0 : i32
    %c0_i32_1 = arith.constant 0 : i32
    return %c0_i32, %c0_i32_0 : i32, i32
  }
}

</mosaic_0001>

<llo_original>
// kernel: tpu_custom_call.1
$region0: #{tpu_custom_call.1}
  #allocation0 [shape = 'u32[]', space=smem, size = 0x4, offset = 0x4, fixed_abs, tag = 'smem constant byte address 0x4 - core index']
  #allocation1 [shape = 'u32[72,128]{1,0:T(1,128)}', space=vmem, size = 0x9000, scoped, tag = 'internal scratch']
  %s0 = inlined_call_operand.hbm [shape: f32[16,32], index: 0, kind: input, shape index: {}]
  %s1 = inlined_call_operand.hbm [shape: f32[16,32], index: 1, kind: input, shape index: {}]
  %s2 = inlined_call_operand.hbm [shape: f32[16,32], index: 2, kind: input, shape index: {}]
  %s3 = inlined_call_operand.hbm [shape: f32[8,8,8], index: 3, kind: input, shape index: {}]
  %s4 = inlined_call_operand.hbm [shape: f32[32,96], index: 4, kind: input, shape index: {}]
  %s5 = inlined_call_operand.hbm [shape: f32[32,32], index: 5, kind: input, shape index: {}]
  %s6 = inlined_call_operand.vmem [shape: f32[2,32], index: 6, kind: input, shape index: {}]
  %s7 = inlined_call_operand.hbm [shape: f32[16,32], index: 7, kind: output, shape index: {}]
  %s8 = sld [smem:[#allocation0]]
  $region62: #{tpu_custom_call.1} parent=0
    _
  %s10 = ssub.s32 1, %s8
  %s11 = scalar_select 0, %s10, %s8
  $region1: #{tpu_custom_call.1} parent=0
    #allocation2 [shape = 'u8[8192]{0}', space=vmem, size = 0x2000, scoped, tag = 'input window, operand 0, single buffered']
    #allocation3 [shape = 's32[1]{0}', space=sflag, size = 0x4, scoped, tag = 'scoped memory for tpu_custom_call.1']
    #allocation4 [shape = 's32[1]{0}', space=sflag, size = 0x4, scoped, tag = 'scoped memory for tpu_custom_call.1']
    #allocation5 [shape = 'u8[8192]{0}', space=vmem, size = 0x2000, scoped, tag = 'input window, operand 1, single buffered']
    #allocation6 [shape = 's32[1]{0}', space=sflag, size = 0x4, scoped, tag = 'scoped memory for tpu_custom_call.1']
    #allocation7 [shape = 'u8[8192]{0}', space=vmem, size = 0x2000, scoped, tag = 'input window, operand 2, single buffered']
    #allocation8 [shape = 'u8[32768]{0}', space=vmem, size = 0x8000, scoped, tag = 'input window, operand 3, single buffered']
    #allocation9 [shape = 's32[1]{0}', space=sflag, size = 0x4, scoped, tag = 'scoped memory for tpu_custom_call.1']
    #allocation10 [shape = 'u8[16384]{0}', space=vmem, size = 0x4000, scoped, tag = 'input window, operand 4, single buffered']
    #allocation11 [shape = 'u8[16384]{0}', space=vmem, size = 0x4000, scoped, tag = 'input window, operand 5, single buffered']
    #allocation12 [shape = 's32[1]{0}', space=sflag, size = 0x4, scoped, tag = 'scoped memory for tpu_custom_call.1']
    #allocation13 [shape = 'u8[8192]{0}', space=vmem, size = 0x2000, scoped, tag = 'output window, operand 0, single buffered']
    %12 = vsyncpa [#allocation3], 0
    %13 = vsyncpa [#allocation6], 0
    %14 = vsyncpa [#allocation9], 0
    %15 = vsyncpa [#allocation12], 0
    %16 = vsyncpa [#allocation4], 0
    // Predicated region
    $region2: #{tpu_custom_call.1} parent=1 // pred_check
      _
    $region3: #{tpu_custom_call.1} parent=1 // pred_check_branch
      %18 = sbr.rel (0) target = $region5
    $region4: #{tpu_custom_call.1} parent=1 // pred_region
      %20 = vsyncadd [#allocation3], 0
      %s21 = sshll.u32 %s0, 4
      %s22 = int_to_ptr.hbm [resolvable:$true] %s21
      %s23 = sshll.u32 [#allocation2], 4
      %s24 = int_to_ptr.vmem [resolvable:$true] %s23
      %29 = dma.hbm_to_vmem [thread:$0]  %s22, 256, %s24, [#allocation3], 128, 128, 8
    $region5: #{tpu_custom_call.1} parent=1 // pred_fallthru
      _
    // Predicated region
    $region6: #{tpu_custom_call.1} parent=1 // pred_check
      _
    $region7: #{tpu_custom_call.1} parent=1 // pred_check_branch
      %31 = sbr.rel (0) target = $region9
    $region8: #{tpu_custom_call.1} parent=1 // pred_region
      %33 = vsyncadd [#allocation6], 0
      %s34 = sshll.u32 %s1, 4
      %s35 = int_to_ptr.hbm [resolvable:$true] %s34
      %s36 = sshll.u32 [#allocation5], 4
      %s37 = int_to_ptr.vmem [resolvable:$true] %s36
      %42 = dma.hbm_to_vmem [thread:$0]  %s35, 256, %s37, [#allocation6], 128, 128, 8
    $region9: #{tpu_custom_call.1} parent=1 // pred_fallthru
      _
    // Predicated region
    $region10: #{tpu_custom_call.1} parent=1 // pred_check
      _
    $region11: #{tpu_custom_call.1} parent=1 // pred_check_branch
      %44 = sbr.rel (0) target = $region13
    $region12: #{tpu_custom_call.1} parent=1 // pred_region
      %46 = vsyncadd [#allocation6], 0
      %s47 = sshll.u32 %s2, 4
      %s48 = int_to_ptr.hbm [resolvable:$true] %s47
      %s49 = sshll.u32 [#allocation7], 4
      %s50 = int_to_ptr.vmem [resolvable:$true] %s49
      %55 = dma.hbm_to_vmem [thread:$0]  %s48, 256, %s50, [#allocation6], 128, 128, 8
    $region13: #{tpu_custom_call.1} parent=1 // pred_fallthru
      _
    // Predicated region
    $region14: #{tpu_custom_call.1} parent=1 // pred_check
      _
    $region15: #{tpu_custom_call.1} parent=1 // pred_check_branch
      %57 = sbr.rel (0) target = $region17
    $region16: #{tpu_custom_call.1} parent=1 // pred_region
      %59 = vsyncadd [#allocation9], 0
      %s60 = sshll.u32 %s3, 4
      %s61 = int_to_ptr.hbm [resolvable:$true] %s60
      %s62 = sshll.u32 [#allocation8], 4
      %s63 = int_to_ptr.vmem [resolvable:$true] %s62
      %68 = dma.hbm_to_vmem [thread:$0]  %s61, 1024, %s63, [#allocation9], 128, 128, 8
    $region17: #{tpu_custom_call.1} parent=1 // pred_fallthru
      _
    // Predicated region
    $region18: #{tpu_custom_call.1} parent=1 // pred_check
      _
    $region19: #{tpu_custom_call.1} parent=1 // pred_check_branch
      %70 = sbr.rel (0) target = $region21
    $region20: #{tpu_custom_call.1} parent=1 // pred_region
      %72 = vsyncadd [#allocation9], 0
      %s73 = sshll.u32 %s4, 4
      %s74 = int_to_ptr.hbm [resolvable:$true] %s73
      %s75 = sshll.u32 [#allocation10], 4
      %s76 = int_to_ptr.vmem [resolvable:$true] %s75
      %81 = dma.hbm_to_vmem [thread:$0]  %s74, 512, %s76, [#allocation9], 128, 128, 8
    $region21: #{tpu_custom_call.1} parent=1 // pred_fallthru
      _
    // Predicated region
    $region22: #{tpu_custom_call.1} parent=1 // pred_check
      _
    $region23: #{tpu_custom_call.1} parent=1 // pred_check_branch
      %83 = sbr.rel (0) target = $region25
    $region24: #{tpu_custom_call.1} parent=1 // pred_region
      %85 = vsyncadd [#allocation12], 0
      %s86 = sshll.u32 %s5, 4
      %s87 = int_to_ptr.hbm [resolvable:$true] %s86
      %s88 = sshll.u32 [#allocation11], 4
      %s89 = int_to_ptr.vmem [resolvable:$true] %s88
      %94 = dma.hbm_to_vmem [thread:$0]  %s87, 512, %s89, [#allocation12], 128, 128, 8
    $region25: #{tpu_custom_call.1} parent=1 // pred_fallthru
      _
    // Predicated region
    $region26: #{tpu_custom_call.1} parent=1 // pred_check
      _
    $region27: #{tpu_custom_call.1} parent=1 // pred_check_branch
      %96 = sbr.rel (0) target = $region29
    $region28: #{tpu_custom_call.1} parent=1 // pred_region
      _
    $region29: #{tpu_custom_call.1} parent=1 // pred_fallthru
      _
    // Predicated region
    $region30: #{tpu_custom_call.1} parent=1 // pred_check
      _
    $region31: #{tpu_custom_call.1} parent=1 // pred_check_branch
      %98 = sbr.rel (0) target = $region33
    $region32: #{tpu_custom_call.1} parent=1 // pred_region
      %100 = dma.done [#allocation3], 256
    $region33: #{tpu_custom_call.1} parent=1 // pred_fallthru
      _
    // Predicated region
    $region34: #{tpu_custom_call.1} parent=1 // pred_check
      _
    $region35: #{tpu_custom_call.1} parent=1 // pred_check_branch
      %102 = sbr.rel (0) target = $region37
    $region36: #{tpu_custom_call.1} parent=1 // pred_region
      %104 = dma.done [#allocation6], 256
    $region37: #{tpu_custom_call.1} parent=1 // pred_fallthru
      _
    // Predicated region
    $region38: #{tpu_custom_call.1} parent=1 // pred_check
      _
    $region39: #{tpu_custom_call.1} parent=1 // pred_check_branch
      %106 = sbr.rel (0) target = $region41
    $region40: #{tpu_custom_call.1} parent=1 // pred_region
      %108 = dma.done [#allocation6], 256
    $region41: #{tpu_custom_call.1} parent=1 // pred_fallthru
      _
    // Predicated region
    $region42: #{tpu_custom_call.1} parent=1 // pred_check
      _
    $region43: #{tpu_custom_call.1} parent=1 // pred_check_branch
      %110 = sbr.rel (0) target = $region45
    $region44: #{tpu_custom_call.1} parent=1 // pred_region
      %112 = dma.done [#allocation9], 1024
    $region45: #{tpu_custom_call.1} parent=1 // pred_fallthru
      _
    // Predicated region
    $region46: #{tpu_custom_call.1} parent=1 // pred_check
      _
    $region47: #{tpu_custom_call.1} parent=1 // pred_check_branch
      %114 = sbr.rel (0) target = $region49
    $region48: #{tpu_custom_call.1} parent=1 // pred_region
      %116 = dma.done [#allocation9], 512
    $region49: #{tpu_custom_call.1} parent=1 // pred_fallthru
      _
    // Predicated region
    $region50: #{tpu_custom_call.1} parent=1 // pred_check
      _
    $region51: #{tpu_custom_call.1} parent=1 // pred_check_branch
      %118 = sbr.rel (0) target = $region53
    $region52: #{tpu_custom_call.1} parent=1 // pred_region
      %120 = dma.done [#allocation12], 512
    $region53: #{tpu_custom_call.1} parent=1 // pred_fallthru
      _
    %v121 = vld [vmem:[#allocation2] sm:$0xff]
    %v122 = vld [vmem:[#allocation2 + $0x8] sm:$0xff]
    %v123 = vld [vmem:[#allocation5] sm:$0xff]
    %v124 = vld [vmem:[#allocation5 + $0x8] sm:$0xff]
    %v125 = vld [vmem:[#allocation7] sm:$0xff]
    %v126 = vld [vmem:[#allocation7 + $0x8] sm:$0xff]
    %v127 = vld [vmem:[#allocation10] sm:$0xff]
    %v128 = vld [vmem:[#allocation10 + $0x8] sm:$0xff]
    %v129 = vld [vmem:[#allocation10 + $0x10] sm:$0xff]
    %v130 = vld [vmem:[#allocation10 + $0x18] sm:$0xff]
    %vm131 = vcmask 261120
    %v133 = vsel %vm131, %v121, 0
    %v136 = vsel %vm131, %v122, 0
    %138 = vmatpush.msra.mxu0 0.0
    %139 = vmatpush.msra.mxu0 0.0
    %140 = vmatpush.msra.mxu0 0.0
    %141 = vmatpush.msra.mxu0 0.0
    %142 = vmatpush.msra.mxu0 0.0
    %143 = vmatpush.msra.mxu0 0.0
    %144 = vmatpush.msra.mxu0 0.0
    %145 = vmatpush.msra.mxu0 0.0
    %146 = vmatpush.msra.mxu0 0.0
    %147 = vmatpush.msra.mxu0 0.0
    %148 = vmatpush.msra.mxu0 0.0
    %149 = vmatpush.msra.mxu0 0.0
    %150 = vmatpush.msra.mxu0 %v130
    %151 = vmatpush.msra.mxu0 %v129
    %152 = vmatpush.msra.mxu0 %v128
    %153 = vmatpush.msra.mxu0 %v127
    %154 = vmatmul.f32.gmra.mxu0 %v133
    %v155 = vpop.f32.mrf.mxu0
    %v156 = vadd.f32 0.0, %v155
    %157 = vmatmul.f32.gmra.mxu0 %v136
    %v158 = vpop.f32.mrf.mxu0
    %v159 = vadd.f32 0.0, %v158
    %160 = vdwg.mxu0
    %165 = vrot.lane.b32.xlu0 %v127, 96
    %v166 = vpop.permute.xlu0 %165
    %167 = vrot.lane.b32.xlu0 %v128, 96
    %v168 = vpop.permute.xlu0 %167
    %169 = vrot.lane.b32.xlu0 %v129, 96
    %v170 = vpop.permute.xlu0 %169
    %171 = vrot.lane.b32.xlu0 %v130, 96
    %v172 = vpop.permute.xlu0 %171
    %v178 = vsel %vm131, %v123, 0
    %v181 = vsel %vm131, %v124, 0
    %183 = vmatpush.msra.mxu0 0.0
    %184 = vmatpush.msra.mxu0 0.0
    %185 = vmatpush.msra.mxu0 0.0
    %186 = vmatpush.msra.mxu0 0.0
    %187 = vmatpush.msra.mxu0 0.0
    %188 = vmatpush.msra.mxu0 0.0
    %189 = vmatpush.msra.mxu0 0.0
    %190 = vmatpush.msra.mxu0 0.0
    %191 = vmatpush.msra.mxu0 0.0
    %192 = vmatpush.msra.mxu0 0.0
    %193 = vmatpush.msra.mxu0 0.0
    %194 = vmatpush.msra.mxu0 0.0
    %195 = vmatpush.msra.mxu0 %v172
    %196 = vmatpush.msra.mxu0 %v170
    %197 = vmatpush.msra.mxu0 %v168
    %198 = vmatpush.msra.mxu0 %v166
    %199 = vmatmul.f32.gmra.mxu0 %v178
    %v200 = vpop.f32.mrf.mxu0
    %v201 = vadd.f32 0.0, %v200
    %202 = vmatmul.f32.gmra.mxu0 %v181
    %v203 = vpop.f32.mrf.mxu0
    %v204 = vadd.f32 0.0, %v203
    %205 = vdwg.mxu0
    %206 = vrot.lane.b32.xlu0 %v127, 64
    %v207 = vpop.permute.xlu0 %206
    %208 = vrot.lane.b32.xlu0 %v128, 64
    %v209 = vpop.permute.xlu0 %208
    %210 = vrot.lane.b32.xlu0 %v129, 64
    %v211 = vpop.permute.xlu0 %210
    %212 = vrot.lane.b32.xlu0 %v130, 64
    %v213 = vpop.permute.xlu0 %212
    %v219 = vsel %vm131, %v125, 0
    %v222 = vsel %vm131, %v126, 0
    %224 = vmatpush.msra.mxu0 0.0
    %225 = vmatpush.msra.mxu0 0.0
    %226 = vmatpush.msra.mxu0 0.0
    %227 = vmatpush.msra.mxu0 0.0
    %228 = vmatpush.msra.mxu0 0.0
    %229 = vmatpush.msra.mxu0 0.0
    %230 = vmatpush.msra.mxu0 0.0
    %231 = vmatpush.msra.mxu0 0.0
    %232 = vmatpush.msra.mxu0 0.0
    %233 = vmatpush.msra.mxu0 0.0
    %234 = vmatpush.msra.mxu0 0.0
    %235 = vmatpush.msra.mxu0 0.0
    %236 = vmatpush.msra.mxu0 %v213
    %237 = vmatpush.msra.mxu0 %v211
    %238 = vmatpush.msra.mxu0 %v209
    %239 = vmatpush.msra.mxu0 %v207
    %240 = vmatmul.f32.gmra.mxu0 %v219
    %v241 = vpop.f32.mrf.mxu0
    %v242 = vadd.f32 0.0, %v241
    %243 = vmatmul.f32.gmra.mxu0 %v222
    %v244 = vpop.f32.mrf.mxu0
    %v245 = vadd.f32 0.0, %v244
    %246 = vdwg.mxu0
    %249 = vrot.lane.b32.xlu0 %v156, 120
    %v250 = vpop.permute.xlu0 %249
    %251 = vrot.lane.b32.xlu0 %v159, 120
    %v252 = vpop.permute.xlu0 %251
    %255 = vrot.lane.b32.xlu0 %v156, 112
    %v256 = vpop.permute.xlu0 %255
    %257 = vrot.lane.b32.xlu0 %v159, 112
    %v258 = vpop.permute.xlu0 %257
    %261 = vrot.lane.b32.xlu0 %v156, 104
    %v262 = vpop.permute.xlu0 %261
    %263 = vrot.lane.b32.xlu0 %v159, 104
    %v264 = vpop.permute.xlu0 %263
    %v267 = vrot.slane %v256, 4
    %vm268 = vcmask 1047556
    %v269 = vsel %vm268, %v267, %v156
    %v270 = vrot.slane %v156, 4
    %v271 = vsel %vm268, %v256, %v270
    %v273 = vunpack.c.l.s4 1983009808
    %v274 = vunpack.c.0.s8 %v273
    %v275 = vperm.slane %v269, %v274
    %v277 = vunpack.c.l.s4 1983009808
    %v278 = vunpack.c.0.s8 %v277
    %v279 = vperm.slane %v271, %v278
    %v280 = vrot.slane %v262, 4
    %v281 = vsel %vm268, %v280, %v250
    %v282 = vrot.slane %v250, 4
    %v283 = vsel %vm268, %v262, %v282
    %v285 = vunpack.c.l.s4 1983009808
    %v286 = vunpack.c.0.s8 %v285
    %v287 = vperm.slane %v281, %v286
    %v289 = vunpack.c.l.s4 1983009808
    %v290 = vunpack.c.0.s8 %v289
    %v291 = vperm.slane %v283, %v290
    %v292 = vrot.slane %v287, 4
    %v293 = vsel %vm268, %v292, %v275
    %v294 = vrot.slane %v275, 4
    %v295 = vsel %vm268, %v287, %v294
    %v297 = vunpack.c.l.s4 1934713408
    %v298 = vunpack.c.0.s8 %v297
    %v299 = vperm.slane %v293, %v298
    %v301 = vunpack.c.l.s4 1934713408
    %v302 = vunpack.c.0.s8 %v301
    %v303 = vperm.slane %v295, %v302
    %v304 = vrot.slane %v291, 4
    %v305 = vsel %vm268, %v304, %v279
    %v306 = vrot.slane %v279, 4
    %v307 = vsel %vm268, %v291, %v306
    %v309 = vunpack.c.l.s4 1934713408
    %v310 = vunpack.c.0.s8 %v309
    %v311 = vperm.slane %v305, %v310
    %v313 = vunpack.c.l.s4 1934713408
    %v314 = vunpack.c.0.s8 %v313
    %v315 = vperm.slane %v307, %v314
    %v316 = vrot.slane %v299, 4
    %v317 = vsel %vm268, 0.0, %v316
    %v318 = vrot.slane %v303, 4
    %v319 = vsel %vm268, 0.0, %v318
    %v320 = vrot.slane %v311, 4
    %v321 = vsel %vm268, 0.0, %v320
    %v322 = vrot.slane %v315, 4
    %v323 = vsel %vm268, 0.0, %v322
    %v324 = vrot.slane %v258, 4
    %v325 = vsel %vm268, %v324, %v159
    %v326 = vrot.slane %v159, 4
    %v327 = vsel %vm268, %v258, %v326
    %v329 = vunpack.c.l.s4 1983009808
    %v330 = vunpack.c.0.s8 %v329
    %v331 = vperm.slane %v325, %v330
    %v333 = vunpack.c.l.s4 1983009808
    %v334 = vunpack.c.0.s8 %v333
    %v335 = vperm.slane %v327, %v334
    %v336 = vrot.slane %v264, 4
    %v337 = vsel %vm268, %v336, %v252
    %v338 = vrot.slane %v252, 4
    %v339 = vsel %vm268, %v264, %v338
    %v341 = vunpack.c.l.s4 1983009808
    %v342 = vunpack.c.0.s8 %v341
    %v343 = vperm.slane %v337, %v342
    %v345 = vunpack.c.l.s4 1983009808
    %v346 = vunpack.c.0.s8 %v345
    %v347 = vperm.slane %v339, %v346
    %v348 = vrot.slane %v343, 4
    %v349 = vsel %vm268, %v348, %v331
    %v350 = vrot.slane %v331, 4
    %v351 = vsel %vm268, %v343, %v350
    %v353 = vunpack.c.l.s4 1934713408
    %v354 = vunpack.c.0.s8 %v353
    %v355 = vperm.slane %v349, %v354
    %v357 = vunpack.c.l.s4 1934713408
    %v358 = vunpack.c.0.s8 %v357
    %v359 = vperm.slane %v351, %v358
    %v360 = vrot.slane %v347, 4
    %v361 = vsel %vm268, %v360, %v335
    %v362 = vrot.slane %v335, 4
    %v363 = vsel %vm268, %v347, %v362
    %v365 = vunpack.c.l.s4 1934713408
    %v366 = vunpack.c.0.s8 %v365
    %v367 = vperm.slane %v361, %v366
    %v369 = vunpack.c.l.s4 1934713408
    %v370 = vunpack.c.0.s8 %v369
    %v371 = vperm.slane %v363, %v370
    %v372 = vrot.slane %v355, 4
    %v373 = vsel %vm268, 0.0, %v372
    %v374 = vrot.slane %v359, 4
    %v375 = vsel %vm268, 0.0, %v374
    %v376 = vrot.slane %v367, 4
    %v377 = vsel %vm268, 0.0, %v376
    %v378 = vrot.slane %v371, 4
    %v379 = vsel %vm268, 0.0, %v378
    %v380 = vsel %vm268, %v318, %v299
    %v382 = vunpack.c.l.s4 1983009808
    %v383 = vunpack.c.0.s8 %v382
    %v384 = vperm.slane %v380, %v383
    %v385 = vrot.slane %v319, 4
    %v386 = vsel %vm268, %v385, %v317
    %v388 = vunpack.c.l.s4 1983009808
    %v389 = vunpack.c.0.s8 %v388
    %v390 = vperm.slane %v386, %v389
    %v391 = vsel %vm268, %v322, %v311
    %v393 = vunpack.c.l.s4 1983009808
    %v394 = vunpack.c.0.s8 %v393
    %v395 = vperm.slane %v391, %v394
    %v396 = vrot.slane %v323, 4
    %v397 = vsel %vm268, %v396, %v321
    %v399 = vunpack.c.l.s4 1983009808
    %v400 = vunpack.c.0.s8 %v399
    %v401 = vperm.slane %v397, %v400
    %v402 = vrot.slane %v390, 4
    %v403 = vsel %vm268, %v402, %v384
    %v404 = vrot.slane %v384, 4
    %v405 = vsel %vm268, %v390, %v404
    %v407 = vunpack.c.l.s4 1934713408
    %v408 = vunpack.c.0.s8 %v407
    %v409 = vperm.slane %v403, %v408
    %v411 = vunpack.c.l.s4 1934713408
    %v412 = vunpack.c.0.s8 %v411
    %v413 = vperm.slane %v405, %v412
    %v414 = vrot.slane %v401, 4
    %v415 = vsel %vm268, %v414, %v395
    %v416 = vrot.slane %v395, 4
    %v417 = vsel %vm268, %v401, %v416
    %v419 = vunpack.c.l.s4 1934713408
    %v420 = vunpack.c.0.s8 %v419
    %v421 = vperm.slane %v415, %v420
    %v423 = vunpack.c.l.s4 1934713408
    %v424 = vunpack.c.0.s8 %v423
    %v425 = vperm.slane %v417, %v424
    %v426 = vrot.slane %v421, 4
    %v427 = vsel %vm268, %v426, %v409
    %v428 = vrot.slane %v409, 4
    %v429 = vsel %vm268, %v421, %v428
    %v430 = vrot.slane %v425, 4
    %v431 = vsel %vm268, %v430, %v413
    %v432 = vrot.slane %v413, 4
    %v433 = vsel %vm268, %v425, %v432
    %v434 = vsel %vm268, %v374, %v355
    %v436 = vunpack.c.l.s4 1983009808
    %v437 = vunpack.c.0.s8 %v436
    %v438 = vperm.slane %v434, %v437
    %v439 = vrot.slane %v375, 4
    %v440 = vsel %vm268, %v439, %v373
    %v442 = vunpack.c.l.s4 1983009808
    %v443 = vunpack.c.0.s8 %v442
    %v444 = vperm.slane %v440, %v443
    %v445 = vsel %vm268, %v378, %v367
    %v447 = vunpack.c.l.s4 1983009808
    %v448 = vunpack.c.0.s8 %v447
    %v449 = vperm.slane %v445, %v448
    %v450 = vrot.slane %v379, 4
    %v451 = vsel %vm268, %v450, %v377
    %v453 = vunpack.c.l.s4 1983009808
    %v454 = vunpack.c.0.s8 %v453
    %v455 = vperm.slane %v451, %v454
    %v456 = vrot.slane %v444, 4
    %v457 = vsel %vm268, %v456, %v438
    %v458 = vrot.slane %v438, 4
    %v459 = vsel %vm268, %v444, %v458
    %v461 = vunpack.c.l.s4 1934713408
    %v462 = vunpack.c.0.s8 %v461
    %v463 = vperm.slane %v457, %v462
    %v465 = vunpack.c.l.s4 1934713408
    %v466 = vunpack.c.0.s8 %v465
    %v467 = vperm.slane %v459, %v466
    %v468 = vrot.slane %v455, 4
    %v469 = vsel %vm268, %v468, %v449
    %v470 = vrot.slane %v449, 4
    %v471 = vsel %vm268, %v455, %v470
    %v473 = vunpack.c.l.s4 1934713408
    %v474 = vunpack.c.0.s8 %v473
    %v475 = vperm.slane %v469, %v474
    %v477 = vunpack.c.l.s4 1934713408
    %v478 = vunpack.c.0.s8 %v477
    %v479 = vperm.slane %v471, %v478
    %v480 = vrot.slane %v475, 4
    %v481 = vsel %vm268, %v480, %v463
    %v482 = vrot.slane %v463, 4
    %v483 = vsel %vm268, %v475, %v482
    %v484 = vrot.slane %v479, 4
    %v485 = vsel %vm268, %v484, %v467
    %v486 = vrot.slane %v467, 4
    %v487 = vsel %vm268, %v479, %v486
    %490 = vrot.lane.b32.xlu0 %v201, 120
    %v491 = vpop.permute.xlu0 %490
    %492 = vrot.lane.b32.xlu0 %v204, 120
    %v493 = vpop.permute.xlu0 %492
    %496 = vrot.lane.b32.xlu0 %v201, 112
    %v497 = vpop.permute.xlu0 %496
    %498 = vrot.lane.b32.xlu0 %v204, 112
    %v499 = vpop.permute.xlu0 %498
    %502 = vrot.lane.b32.xlu0 %v201, 104
    %v503 = vpop.permute.xlu0 %502
    %504 = vrot.lane.b32.xlu0 %v204, 104
    %v505 = vpop.permute.xlu0 %504
    %v508 = vrot.slane %v497, 4
    %v509 = vsel %vm268, %v508, %v201
    %v510 = vrot.slane %v201, 4
    %v511 = vsel %vm268, %v497, %v510
    %v513 = vunpack.c.l.s4 1983009808
    %v514 = vunpack.c.0.s8 %v513
    %v515 = vperm.slane %v509, %v514
    %v517 = vunpack.c.l.s4 1983009808
    %v518 = vunpack.c.0.s8 %v517
    %v519 = vperm.slane %v511, %v518
    %v520 = vrot.slane %v503, 4
    %v521 = vsel %vm268, %v520, %v491
    %v522 = vrot.slane %v491, 4
    %v523 = vsel %vm268, %v503, %v522
    %v525 = vunpack.c.l.s4 1983009808
    %v526 = vunpack.c.0.s8 %v525
    %v527 = vperm.slane %v521, %v526
    %v529 = vunpack.c.l.s4 1983009808
    %v530 = vunpack.c.0.s8 %v529
    %v531 = vperm.slane %v523, %v530
    %v532 = vrot.slane %v527, 4
    %v533 = vsel %vm268, %v532, %v515
    %v534 = vrot.slane %v515, 4
    %v535 = vsel %vm268, %v527, %v534
    %v537 = vunpack.c.l.s4 1934713408
    %v538 = vunpack.c.0.s8 %v537
    %v539 = vperm.slane %v533, %v538
    %v541 = vunpack.c.l.s4 1934713408
    %v542 = vunpack.c.0.s8 %v541
    %v543 = vperm.slane %v535, %v542
    %v544 = vrot.slane %v531, 4
    %v545 = vsel %vm268, %v544, %v519
    %v546 = vrot.slane %v519, 4
    %v547 = vsel %vm268, %v531, %v546
    %v549 = vunpack.c.l.s4 1934713408
    %v550 = vunpack.c.0.s8 %v549
    %v551 = vperm.slane %v545, %v550
    %v553 = vunpack.c.l.s4 1934713408
    %v554 = vunpack.c.0.s8 %v553
    %v555 = vperm.slane %v547, %v554
    %v556 = vrot.slane %v539, 4
    %v557 = vsel %vm268, 0.0, %v556
    %v558 = vrot.slane %v543, 4
    %v559 = vsel %vm268, 0.0, %v558
    %v560 = vrot.slane %v551, 4
    %v561 = vsel %vm268, 0.0, %v560
    %v562 = vrot.slane %v555, 4
    %v563 = vsel %vm268, 0.0, %v562
    %v564 = vrot.slane %v499, 4
    %v565 = vsel %vm268, %v564, %v204
    %v566 = vrot.slane %v204, 4
    %v567 = vsel %vm268, %v499, %v566
    %v569 = vunpack.c.l.s4 1983009808
    %v570 = vunpack.c.0.s8 %v569
    %v571 = vperm.slane %v565, %v570
    %v573 = vunpack.c.l.s4 1983009808
    %v574 = vunpack.c.0.s8 %v573
    %v575 = vperm.slane %v567, %v574
    %v576 = vrot.slane %v505, 4
    %v577 = vsel %vm268, %v576, %v493
    %v578 = vrot.slane %v493, 4
    %v579 = vsel %vm268, %v505, %v578
    %v581 = vunpack.c.l.s4 1983009808
    %v582 = vunpack.c.0.s8 %v581
    %v583 = vperm.slane %v577, %v582
    %v585 = vunpack.c.l.s4 1983009808
    %v586 = vunpack.c.0.s8 %v585
    %v587 = vperm.slane %v579, %v586
    %v588 = vrot.slane %v583, 4
    %v589 = vsel %vm268, %v588, %v571
    %v590 = vrot.slane %v571, 4
    %v591 = vsel %vm268, %v583, %v590
    %v593 = vunpack.c.l.s4 1934713408
    %v594 = vunpack.c.0.s8 %v593
    %v595 = vperm.slane %v589, %v594
    %v597 = vunpack.c.l.s4 1934713408
    %v598 = vunpack.c.0.s8 %v597
    %v599 = vperm.slane %v591, %v598
    %v600 = vrot.slane %v587, 4
    %v601 = vsel %vm268, %v600, %v575
    %v602 = vrot.slane %v575, 4
    %v603 = vsel %vm268, %v587, %v602
    %v605 = vunpack.c.l.s4 1934713408
    %v606 = vunpack.c.0.s8 %v605
    %v607 = vperm.slane %v601, %v606
    %v609 = vunpack.c.l.s4 1934713408
    %v610 = vunpack.c.0.s8 %v609
    %v611 = vperm.slane %v603, %v610
    %v612 = vrot.slane %v595, 4
    %v613 = vsel %vm268, 0.0, %v612
    %v614 = vrot.slane %v599, 4
    %v615 = vsel %vm268, 0.0, %v614
    %v616 = vrot.slane %v607, 4
    %v617 = vsel %vm268, 0.0, %v616
    %v618 = vrot.slane %v611, 4
    %v619 = vsel %vm268, 0.0, %v618
    %v620 = vsel %vm268, %v558, %v539
    %v622 = vunpack.c.l.s4 1983009808
    %v623 = vunpack.c.0.s8 %v622
    %v624 = vperm.slane %v620, %v623
    %v625 = vrot.slane %v559, 4
    %v626 = vsel %vm268, %v625, %v557
    %v628 = vunpack.c.l.s4 1983009808
    %v629 = vunpack.c.0.s8 %v628
    %v630 = vperm.slane %v626, %v629
    %v631 = vsel %vm268, %v562, %v551
    %v633 = vunpack.c.l.s4 1983009808
    %v634 = vunpack.c.0.s8 %v633
    %v635 = vperm.slane %v631, %v634
    %v636 = vrot.slane %v563, 4
    %v637 = vsel %vm268, %v636, %v561
    %v639 = vunpack.c.l.s4 1983009808
    %v640 = vunpack.c.0.s8 %v639
    %v641 = vperm.slane %v637, %v640
    %v642 = vrot.slane %v630, 4
    %v643 = vsel %vm268, %v642, %v624
    %v644 = vrot.slane %v624, 4
    %v645 = vsel %vm268, %v630, %v644
    %v647 = vunpack.c.l.s4 1934713408
    %v648 = vunpack.c.0.s8 %v647
    %v649 = vperm.slane %v643, %v648
    %v651 = vunpack.c.l.s4 1934713408
    %v652 = vunpack.c.0.s8 %v651
    %v653 = vperm.slane %v645, %v652
    %v654 = vrot.slane %v641, 4
    %v655 = vsel %vm268, %v654, %v635
    %v656 = vrot.slane %v635, 4
    %v657 = vsel %vm268, %v641, %v656
    %v659 = vunpack.c.l.s4 1934713408
    %v660 = vunpack.c.0.s8 %v659
    %v661 = vperm.slane %v655, %v660
    %v663 = vunpack.c.l.s4 1934713408
    %v664 = vunpack.c.0.s8 %v663
    %v665 = vperm.slane %v657, %v664
    %v666 = vrot.slane %v661, 4
    %v667 = vsel %vm268, %v666, %v649
    %v668 = vrot.slane %v649, 4
    %v669 = vsel %vm268, %v661, %v668
    %v670 = vrot.slane %v665, 4
    %v671 = vsel %vm268, %v670, %v653
    %v672 = vrot.slane %v653, 4
    %v673 = vsel %vm268, %v665, %v672
    %v674 = vsel %vm268, %v614, %v595
    %v676 = vunpack.c.l.s4 1983009808
    %v677 = vunpack.c.0.s8 %v676
    %v678 = vperm.slane %v674, %v677
    %v679 = vrot.slane %v615, 4
    %v680 = vsel %vm268, %v679, %v613
    %v682 = vunpack.c.l.s4 1983009808
    %v683 = vunpack.c.0.s8 %v682
    %v684 = vperm.slane %v680, %v683
    %v685 = vsel %vm268, %v618, %v607
    %v687 = vunpack.c.l.s4 1983009808
    %v688 = vunpack.c.0.s8 %v687
    %v689 = vperm.slane %v685, %v688
    %v690 = vrot.slane %v619, 4
    %v691 = vsel %vm268, %v690, %v617
    %v693 = vunpack.c.l.s4 1983009808
    %v694 = vunpack.c.0.s8 %v693
    %v695 = vperm.slane %v691, %v694
    %v696 = vrot.slane %v684, 4
    %v697 = vsel %vm268, %v696, %v678
    %v698 = vrot.slane %v678, 4
    %v699 = vsel %vm268, %v684, %v698
    %v701 = vunpack.c.l.s4 1934713408
    %v702 = vunpack.c.0.s8 %v701
    %v703 = vperm.slane %v697, %v702
    %v705 = vunpack.c.l.s4 1934713408
    %v706 = vunpack.c.0.s8 %v705
    %v707 = vperm.slane %v699, %v706
    %v708 = vrot.slane %v695, 4
    %v709 = vsel %vm268, %v708, %v689
    %v710 = vrot.slane %v689, 4
    %v711 = vsel %vm268, %v695, %v710
    %v713 = vunpack.c.l.s4 1934713408
    %v714 = vunpack.c.0.s8 %v713
    %v715 = vperm.slane %v709, %v714
    %v717 = vunpack.c.l.s4 1934713408
    %v718 = vunpack.c.0.s8 %v717
    %v719 = vperm.slane %v711, %v718
    %v720 = vrot.slane %v715, 4
    %v721 = vsel %vm268, %v720, %v703
    %v722 = vrot.slane %v703, 4
    %v723 = vsel %vm268, %v715, %v722
    %v724 = vrot.slane %v719, 4
    %v725 = vsel %vm268, %v724, %v707
    %v726 = vrot.slane %v707, 4
    %v727 = vsel %vm268, %v719, %v726
    %730 = vrot.lane.b32.xlu0 %v242, 120
    %v731 = vpop.permute.xlu0 %730
    %732 = vrot.lane.b32.xlu0 %v245, 120
    %v733 = vpop.permute.xlu0 %732
    %736 = vrot.lane.b32.xlu0 %v242, 112
    %v737 = vpop.permute.xlu0 %736
    %738 = vrot.lane.b32.xlu0 %v245, 112
    %v739 = vpop.permute.xlu0 %738
    %742 = vrot.lane.b32.xlu0 %v242, 104
    %v743 = vpop.permute.xlu0 %742
    %744 = vrot.lane.b32.xlu0 %v245, 104
    %v745 = vpop.permute.xlu0 %744
    %v748 = vrot.slane %v737, 4
    %v749 = vsel %vm268, %v748, %v242
    %v750 = vrot.slane %v242, 4
    %v751 = vsel %vm268, %v737, %v750
    %v753 = vunpack.c.l.s4 1983009808
    %v754 = vunpack.c.0.s8 %v753
    %v755 = vperm.slane %v749, %v754
    %v757 = vunpack.c.l.s4 1983009808
    %v758 = vunpack.c.0.s8 %v757
    %v759 = vperm.slane %v751, %v758
    %v760 = vrot.slane %v743, 4
    %v761 = vsel %vm268, %v760, %v731
    %v762 = vrot.slane %v731, 4
    %v763 = vsel %vm268, %v743, %v762
    %v765 = vunpack.c.l.s4 1983009808
    %v766 = vunpack.c.0.s8 %v765
    %v767 = vperm.slane %v761, %v766
    %v769 = vunpack.c.l.s4 1983009808
    %v770 = vunpack.c.0.s8 %v769
    %v771 = vperm.slane %v763, %v770
    %v772 = vrot.slane %v767, 4
    %v773 = vsel %vm268, %v772, %v755
    %v774 = vrot.slane %v755, 4
    %v775 = vsel %vm268, %v767, %v774
    %v777 = vunpack.c.l.s4 1934713408
    %v778 = vunpack.c.0.s8 %v777
    %v779 = vperm.slane %v773, %v778
    %v781 = vunpack.c.l.s4 1934713408
    %v782 = vunpack.c.0.s8 %v781
    %v783 = vperm.slane %v775, %v782
    %v784 = vrot.slane %v771, 4
    %v785 = vsel %vm268, %v784, %v759
    %v786 = vrot.slane %v759, 4
    %v787 = vsel %vm268, %v771, %v786
    %v789 = vunpack.c.l.s4 1934713408
    %v790 = vunpack.c.0.s8 %v789
    %v791 = vperm.slane %v785, %v790
    %v793 = vunpack.c.l.s4 1934713408
    %v794 = vunpack.c.0.s8 %v793
    %v795 = vperm.slane %v787, %v794
    %v796 = vrot.slane %v779, 4
    %v797 = vsel %vm268, 0.0, %v796
    %v798 = vrot.slane %v783, 4
    %v799 = vsel %vm268, 0.0, %v798
    %v800 = vrot.slane %v791, 4
    %v801 = vsel %vm268, 0.0, %v800
    %v802 = vrot.slane %v795, 4
    %v803 = vsel %vm268, 0.0, %v802
    %v804 = vrot.slane %v739, 4
    %v805 = vsel %vm268, %v804, %v245
    %v806 = vrot.slane %v245, 4
    %v807 = vsel %vm268, %v739, %v806
    %v809 = vunpack.c.l.s4 1983009808
    %v810 = vunpack.c.0.s8 %v809
    %v811 = vperm.slane %v805, %v810
    %v813 = vunpack.c.l.s4 1983009808
    %v814 = vunpack.c.0.s8 %v813
    %v815 = vperm.slane %v807, %v814
    %v816 = vrot.slane %v745, 4
    %v817 = vsel %vm268, %v816, %v733
    %v818 = vrot.slane %v733, 4
    %v819 = vsel %vm268, %v745, %v818
    %v821 = vunpack.c.l.s4 1983009808
    %v822 = vunpack.c.0.s8 %v821
    %v823 = vperm.slane %v817, %v822
    %v825 = vunpack.c.l.s4 1983009808
    %v826 = vunpack.c.0.s8 %v825
    %v827 = vperm.slane %v819, %v826
    %v828 = vrot.slane %v823, 4
    %v829 = vsel %vm268, %v828, %v811
    %v830 = vrot.slane %v811, 4
    %v831 = vsel %vm268, %v823, %v830
    %v833 = vunpack.c.l.s4 1934713408
    %v834 = vunpack.c.0.s8 %v833
    %v835 = vperm.slane %v829, %v834
    %v837 = vunpack.c.l.s4 1934713408
    %v838 = vunpack.c.0.s8 %v837
    %v839 = vperm.slane %v831, %v838
    %v840 = vrot.slane %v827, 4
    %v841 = vsel %vm268, %v840, %v815
    %v842 = vrot.slane %v815, 4
    %v843 = vsel %vm268, %v827, %v842
    %v845 = vunpack.c.l.s4 1934713408
    %v846 = vunpack.c.0.s8 %v845
    %v847 = vperm.slane %v841, %v846
    %v849 = vunpack.c.l.s4 1934713408
    %v850 = vunpack.c.0.s8 %v849
    %v851 = vperm.slane %v843, %v850
    %v852 = vrot.slane %v835, 4
    %v853 = vsel %vm268, 0.0, %v852
    %v854 = vrot.slane %v839, 4
    %v855 = vsel %vm268, 0.0, %v854
    %v856 = vrot.slane %v847, 4
    %v857 = vsel %vm268, 0.0, %v856
    %v858 = vrot.slane %v851, 4
    %v859 = vsel %vm268, 0.0, %v858
    %v860 = vsel %vm268, %v798, %v779
    %v862 = vunpack.c.l.s4 1983009808
    %v863 = vunpack.c.0.s8 %v862
    %v864 = vperm.slane %v860, %v863
    %v865 = vrot.slane %v799, 4
    %v866 = vsel %vm268, %v865, %v797
    %v868 = vunpack.c.l.s4 1983009808
    %v869 = vunpack.c.0.s8 %v868
    %v870 = vperm.slane %v866, %v869
    %v871 = vsel %vm268, %v802, %v791
    %v873 = vunpack.c.l.s4 1983009808
    %v874 = vunpack.c.0.s8 %v873
    %v875 = vperm.slane %v871, %v874
    %v876 = vrot.slane %v803, 4
    %v877 = vsel %vm268, %v876, %v801
    %v879 = vunpack.c.l.s4 1983009808
    %v880 = vunpack.c.0.s8 %v879
    %v881 = vperm.slane %v877, %v880
    %v882 = vrot.slane %v870, 4
    %v883 = vsel %vm268, %v882, %v864
    %v884 = vrot.slane %v864, 4
    %v885 = vsel %vm268, %v870, %v884
    %v887 = vunpack.c.l.s4 1934713408
    %v888 = vunpack.c.0.s8 %v887
    %v889 = vperm.slane %v883, %v888
    %v891 = vunpack.c.l.s4 1934713408
    %v892 = vunpack.c.0.s8 %v891
    %v893 = vperm.slane %v885, %v892
    %v894 = vrot.slane %v881, 4
    %v895 = vsel %vm268, %v894, %v875
    %v896 = vrot.slane %v875, 4
    %v897 = vsel %vm268, %v881, %v896
    %v899 = vunpack.c.l.s4 1934713408
    %v900 = vunpack.c.0.s8 %v899
    %v901 = vperm.slane %v895, %v900
    %v903 = vunpack.c.l.s4 1934713408
    %v904 = vunpack.c.0.s8 %v903
    %v905 = vperm.slane %v897, %v904
    %v906 = vrot.slane %v901, 4
    %v907 = vsel %vm268, %v906, %v889
    %v908 = vrot.slane %v889, 4
    %v909 = vsel %vm268, %v901, %v908
    %v910 = vrot.slane %v905, 4
    %v911 = vsel %vm268, %v910, %v893
    %v912 = vrot.slane %v893, 4
    %v913 = vsel %vm268, %v905, %v912
    %v914 = vsel %vm268, %v854, %v835
    %v916 = vunpack.c.l.s4 1983009808
    %v917 = vunpack.c.0.s8 %v916
    %v918 = vperm.slane %v914, %v917
    %v919 = vrot.slane %v855, 4
    %v920 = vsel %vm268, %v919, %v853
    %v922 = vunpack.c.l.s4 1983009808
    %v923 = vunpack.c.0.s8 %v922
    %v924 = vperm.slane %v920, %v923
    %v925 = vsel %vm268, %v858, %v847
    %v927 = vunpack.c.l.s4 1983009808
    %v928 = vunpack.c.0.s8 %v927
    %v929 = vperm.slane %v925, %v928
    %v930 = vrot.slane %v859, 4
    %v931 = vsel %vm268, %v930, %v857
    %v933 = vunpack.c.l.s4 1983009808
    %v934 = vunpack.c.0.s8 %v933
    %v935 = vperm.slane %v931, %v934
    %v936 = vrot.slane %v924, 4
    %v937 = vsel %vm268, %v936, %v918
    %v938 = vrot.slane %v918, 4
    %v939 = vsel %vm268, %v924, %v938
    %v941 = vunpack.c.l.s4 1934713408
    %v942 = vunpack.c.0.s8 %v941
    %v943 = vperm.slane %v937, %v942
    %v945 = vunpack.c.l.s4 1934713408
    %v946 = vunpack.c.0.s8 %v945
    %v947 = vperm.slane %v939, %v946
    %v948 = vrot.slane %v935, 4
    %v949 = vsel %vm268, %v948, %v929
    %v950 = vrot.slane %v929, 4
    %v951 = vsel %vm268, %v935, %v950
    %v953 = vunpack.c.l.s4 1934713408
    %v954 = vunpack.c.0.s8 %v953
    %v955 = vperm.slane %v949, %v954
    %v957 = vunpack.c.l.s4 1934713408
    %v958 = vunpack.c.0.s8 %v957
    %v959 = vperm.slane %v951, %v958
    %v960 = vrot.slane %v955, 4
    %v961 = vsel %vm268, %v960, %v943
    %v962 = vrot.slane %v943, 4
    %v963 = vsel %vm268, %v955, %v962
    %v964 = vrot.slane %v959, 4
    %v965 = vsel %vm268, %v964, %v947
    %v966 = vrot.slane %v947, 4
    %v967 = vsel %vm268, %v959, %v966
    %v968 = vld [vmem:[#allocation8] sm:$0xff]
    %v969 = vld [vmem:[#allocation8 + $0x8] sm:$0xff]
    %v970 = vld [vmem:[#allocation8 + $0x10] sm:$0xff]
    %v971 = vld [vmem:[#allocation8 + $0x18] sm:$0xff]
    %v972 = vld [vmem:[#allocation8 + $0x20] sm:$0xff]
    %v973 = vld [vmem:[#allocation8 + $0x28] sm:$0xff]
    %v974 = vld [vmem:[#allocation8 + $0x30] sm:$0xff]
    %v975 = vld [vmem:[#allocation8 + $0x38] sm:$0xff]
    %vm976 = vcmask 64512
    %v978 = vsel %vm976, %v427, 0
    %v981 = vsel %vm976, %v667, 0
    %983 = vmatpush.xpose.msra.mxu0 0.0
    %984 = vmatpush.xpose.msra.mxu0 0.0
    %985 = vmatpush.xpose.msra.mxu0 0.0
    %986 = vmatpush.xpose.msra.mxu0 0.0
    %987 = vmatpush.xpose.msra.mxu0 0.0
    %988 = vmatpush.xpose.msra.mxu0 0.0
    %989 = vmatpush.xpose.msra.mxu0 0.0
    %990 = vmatpush.xpose.msra.mxu0 0.0
    %991 = vmatpush.xpose.msra.mxu0 0.0
    %992 = vmatpush.xpose.msra.mxu0 0.0
    %993 = vmatpush.xpose.msra.mxu0 0.0
    %994 = vmatpush.xpose.msra.mxu0 0.0
    %995 = vmatpush.xpose.msra.mxu0 0.0
    %996 = vmatpush.xpose.msra.mxu0 0.0
    %997 = vmatpush.xpose.msra.mxu0 0.0
    %998 = vmatpush.xpose.msra.mxu0 %v981
    %999 = vmatmul.f32.gmra.mxu0 %v978
    %v1000 = vpop.f32.mrf.mxu0
    %v1001 = vadd.f32 %v968, %v1000
    %1002 = vdwg.mxu0
    %v1004 = vsel %vm976, %v481, 0
    %v1007 = vsel %vm976, %v721, 0
    %1009 = vmatpush.xpose.msra.mxu0 0.0
    %1010 = vmatpush.xpose.msra.mxu0 0.0
    %1011 = vmatpush.xpose.msra.mxu0 0.0
    %1012 = vmatpush.xpose.msra.mxu0 0.0
    %1013 = vmatpush.xpose.msra.mxu0 0.0
    %1014 = vmatpush.xpose.msra.mxu0 0.0
    %1015 = vmatpush.xpose.msra.mxu0 0.0
    %1016 = vmatpush.xpose.msra.mxu0 0.0
    %1017 = vmatpush.xpose.msra.mxu0 0.0
    %1018 = vmatpush.xpose.msra.mxu0 0.0
    %1019 = vmatpush.xpose.msra.mxu0 0.0
    %1020 = vmatpush.xpose.msra.mxu0 0.0
    %1021 = vmatpush.xpose.msra.mxu0 0.0
    %1022 = vmatpush.xpose.msra.mxu0 0.0
    %1023 = vmatpush.xpose.msra.mxu0 0.0
    %1024 = vmatpush.xpose.msra.mxu0 %v1007
    %1025 = vmatmul.f32.gmra.mxu0 %v1004
    %v1026 = vpop.f32.mrf.mxu0
    %v1027 = vadd.f32 %v969, %v1026
    %1028 = vdwg.mxu0
    %v1030 = vsel %vm976, %v429, 0
    %v1033 = vsel %vm976, %v669, 0
    %1035 = vmatpush.xpose.msra.mxu0 0.0
    %1036 = vmatpush.xpose.msra.mxu0 0.0
    %1037 = vmatpush.xpose.msra.mxu0 0.0
    %1038 = vmatpush.xpose.msra.mxu0 0.0
    %1039 = vmatpush.xpose.msra.mxu0 0.0
    %1040 = vmatpush.xpose.msra.mxu0 0.0
    %1041 = vmatpush.xpose.msra.mxu0 0.0
    %1042 = vmatpush.xpose.msra.mxu0 0.0
    %1043 = vmatpush.xpose.msra.mxu0 0.0
    %1044 = vmatpush.xpose.msra.mxu0 0.0
    %1045 = vmatpush.xpose.msra.mxu0 0.0
    %1046 = vmatpush.xpose.msra.mxu0 0.0
    %1047 = vmatpush.xpose.msra.mxu0 0.0
    %1048 = vmatpush.xpose.msra.mxu0 0.0
    %1049 = vmatpush.xpose.msra.mxu0 0.0
    %1050 = vmatpush.xpose.msra.mxu0 %v1033
    %1051 = vmatmul.f32.gmra.mxu0 %v1030
    %v1052 = vpop.f32.mrf.mxu0
    %v1053 = vadd.f32 %v970, %v1052
    %1054 = vdwg.mxu0
    %v1056 = vsel %vm976, %v483, 0
    %v1059 = vsel %vm976, %v723, 0
    %1061 = vmatpush.xpose.msra.mxu0 0.0
    %1062 = vmatpush.xpose.msra.mxu0 0.0
    %1063 = vmatpush.xpose.msra.mxu0 0.0
    %1064 = vmatpush.xpose.msra.mxu0 0.0
    %1065 = vmatpush.xpose.msra.mxu0 0.0
    %1066 = vmatpush.xpose.msra.mxu0 0.0
    %1067 = vmatpush.xpose.msra.mxu0 0.0
    %1068 = vmatpush.xpose.msra.mxu0 0.0
    %1069 = vmatpush.xpose.msra.mxu0 0.0
    %1070 = vmatpush.xpose.msra.mxu0 0.0
    %1071 = vmatpush.xpose.msra.mxu0 0.0
    %1072 = vmatpush.xpose.msra.mxu0 0.0
    %1073 = vmatpush.xpose.msra.mxu0 0.0
    %1074 = vmatpush.xpose.msra.mxu0 0.0
    %1075 = vmatpush.xpose.msra.mxu0 0.0
    %1076 = vmatpush.xpose.msra.mxu0 %v1059
    %1077 = vmatmul.f32.gmra.mxu0 %v1056
    %v1078 = vpop.f32.mrf.mxu0
    %v1079 = vadd.f32 %v971, %v1078
    %1080 = vdwg.mxu0
    %v1082 = vsel %vm976, %v431, 0
    %v1085 = vsel %vm976, %v671, 0
    %1087 = vmatpush.xpose.msra.mxu0 0.0
    %1088 = vmatpush.xpose.msra.mxu0 0.0
    %1089 = vmatpush.xpose.msra.mxu0 0.0
    %1090 = vmatpush.xpose.msra.mxu0 0.0
    %1091 = vmatpush.xpose.msra.mxu0 0.0
    %1092 = vmatpush.xpose.msra.mxu0 0.0
    %1093 = vmatpush.xpose.msra.mxu0 0.0
    %1094 = vmatpush.xpose.msra.mxu0 0.0
    %1095 = vmatpush.xpose.msra.mxu0 0.0
    %1096 = vmatpush.xpose.msra.mxu0 0.0
    %1097 = vmatpush.xpose.msra.mxu0 0.0
    %1098 = vmatpush.xpose.msra.mxu0 0.0
    %1099 = vmatpush.xpose.msra.mxu0 0.0
    %1100 = vmatpush.xpose.msra.mxu0 0.0
    %1101 = vmatpush.xpose.msra.mxu0 0.0
    %1102 = vmatpush.xpose.msra.mxu0 %v1085
    %1103 = vmatmul.f32.gmra.mxu0 %v1082
    %v1104 = vpop.f32.mrf.mxu0
    %v1105 = vadd.f32 %v972, %v1104
    %1106 = vdwg.mxu0
    %v1108 = vsel %vm976, %v485, 0
    %v1111 = vsel %vm976, %v725, 0
    %1113 = vmatpush.xpose.msra.mxu0 0.0
    %1114 = vmatpush.xpose.msra.mxu0 0.0
    %1115 = vmatpush.xpose.msra.mxu0 0.0
    %1116 = vmatpush.xpose.msra.mxu0 0.0
    %1117 = vmatpush.xpose.msra.mxu0 0.0
    %1118 = vmatpush.xpose.msra.mxu0 0.0
    %1119 = vmatpush.xpose.msra.mxu0 0.0
    %1120 = vmatpush.xpose.msra.mxu0 0.0
    %1121 = vmatpush.xpose.msra.mxu0 0.0
    %1122 = vmatpush.xpose.msra.mxu0 0.0
    %1123 = vmatpush.xpose.msra.mxu0 0.0
    %1124 = vmatpush.xpose.msra.mxu0 0.0
    %1125 = vmatpush.xpose.msra.mxu0 0.0
    %1126 = vmatpush.xpose.msra.mxu0 0.0
    %1127 = vmatpush.xpose.msra.mxu0 0.0
    %1128 = vmatpush.xpose.msra.mxu0 %v1111
    %1129 = vmatmul.f32.gmra.mxu0 %v1108
    %v1130 = vpop.f32.mrf.mxu0
    %v1131 = vadd.f32 %v973, %v1130
    %1132 = vdwg.mxu0
    %v1134 = vsel %vm976, %v433, 0
    %v1137 = vsel %vm976, %v673, 0
    %1139 = vmatpush.xpose.msra.mxu0 0.0
    %1140 = vmatpush.xpose.msra.mxu0 0.0
    %1141 = vmatpush.xpose.msra.mxu0 0.0
    %1142 = vmatpush.xpose.msra.mxu0 0.0
    %1143 = vmatpush.xpose.msra.mxu0 0.0
    %1144 = vmatpush.xpose.msra.mxu0 0.0
    %1145 = vmatpush.xpose.msra.mxu0 0.0
    %1146 = vmatpush.xpose.msra.mxu0 0.0
    %1147 = vmatpush.xpose.msra.mxu0 0.0
    %1148 = vmatpush.xpose.msra.mxu0 0.0
    %1149 = vmatpush.xpose.msra.mxu0 0.0
    %1150 = vmatpush.xpose.msra.mxu0 0.0
    %1151 = vmatpush.xpose.msra.mxu0 0.0
    %1152 = vmatpush.xpose.msra.mxu0 0.0
    %1153 = vmatpush.xpose.msra.mxu0 0.0
    %1154 = vmatpush.xpose.msra.mxu0 %v1137
    %1155 = vmatmul.f32.gmra.mxu0 %v1134
    %v1156 = vpop.f32.mrf.mxu0
    %v1157 = vadd.f32 %v974, %v1156
    %1158 = vdwg.mxu0
    %v1160 = vsel %vm976, %v487, 0
    %v1163 = vsel %vm976, %v727, 0
    %1165 = vmatpush.xpose.msra.mxu0 0.0
    %1166 = vmatpush.xpose.msra.mxu0 0.0
    %1167 = vmatpush.xpose.msra.mxu0 0.0
    %1168 = vmatpush.xpose.msra.mxu0 0.0
    %1169 = vmatpush.xpose.msra.mxu0 0.0
    %1170 = vmatpush.xpose.msra.mxu0 0.0
    %1171 = vmatpush.xpose.msra.mxu0 0.0
    %1172 = vmatpush.xpose.msra.mxu0 0.0
    %1173 = vmatpush.xpose.msra.mxu0 0.0
    %1174 = vmatpush.xpose.msra.mxu0 0.0
    %1175 = vmatpush.xpose.msra.mxu0 0.0
    %1176 = vmatpush.xpose.msra.mxu0 0.0
    %1177 = vmatpush.xpose.msra.mxu0 0.0
    %1178 = vmatpush.xpose.msra.mxu0 0.0
    %1179 = vmatpush.xpose.msra.mxu0 0.0
    %1180 = vmatpush.xpose.msra.mxu0 %v1163
    %1181 = vmatmul.f32.gmra.mxu0 %v1160
    %v1182 = vpop.f32.mrf.mxu0
    %v1183 = vadd.f32 %v975, %v1182
    %1184 = vdwg.mxu0
    %v1185 = vsel %vm976, %v1001, -inf
    %1186 = vmax.xlane.f32.xlu0 %v1185
    %v1187 = vpop.xlane.xlu0 %1186
    %v1188 = vsel %vm976, %v1027, -inf
    %1189 = vmax.xlane.f32.xlu0 %v1188
    %v1190 = vpop.xlane.xlu0 %1189
    %v1191 = vsel %vm976, %v1053, -inf
    %1192 = vmax.xlane.f32.xlu0 %v1191
    %v1193 = vpop.xlane.xlu0 %1192
    %v1194 = vsel %vm976, %v1079, -inf
    %1195 = vmax.xlane.f32.xlu0 %v1194
    %v1196 = vpop.xlane.xlu0 %1195
    %v1197 = vsel %vm976, %v1105, -inf
    %1198 = vmax.xlane.f32.xlu0 %v1197
    %v1199 = vpop.xlane.xlu0 %1198
    %v1200 = vsel %vm976, %v1131, -inf
    %1201 = vmax.xlane.f32.xlu0 %v1200
    %v1202 = vpop.xlane.xlu0 %1201
    %v1203 = vsel %vm976, %v1157, -inf
    %1204 = vmax.xlane.f32.xlu0 %v1203
    %v1205 = vpop.xlane.xlu0 %1204
    %v1206 = vsel %vm976, %v1183, -inf
    %1207 = vmax.xlane.f32.xlu0 %v1206
    %v1208 = vpop.xlane.xlu0 %1207
    %v1209 = vsub.f32 %v1001, %v1187
    %v1210 = vsub.f32 %v1027, %v1190
    %v1211 = vsub.f32 %v1053, %v1193
    %v1212 = vsub.f32 %v1079, %v1196
    %v1213 = vsub.f32 %v1105, %v1199
    %v1214 = vsub.f32 %v1131, %v1202
    %v1215 = vsub.f32 %v1157, %v1205
    %v1216 = vsub.f32 %v1183, %v1208
    %v1217 = vmul.f32 %v1209, 1.442695
    %v1218 = vpow.pop %v1217
    %v1219 = vmul.f32 %v1210, 1.442695
    %v1220 = vpow.pop %v1219
    %v1221 = vmul.f32 %v1211, 1.442695
    %v1222 = vpow.pop %v1221
    %v1223 = vmul.f32 %v1212, 1.442695
    %v1224 = vpow.pop %v1223
    %v1225 = vmul.f32 %v1213, 1.442695
    %v1226 = vpow.pop %v1225
    %v1227 = vmul.f32 %v1214, 1.442695
    %v1228 = vpow.pop %v1227
    %v1229 = vmul.f32 %v1215, 1.442695
    %v1230 = vpow.pop %v1229
    %v1231 = vmul.f32 %v1216, 1.442695
    %v1232 = vpow.pop %v1231
    %v1233 = vsel %vm976, %v1218, 0.0
    %1234 = vadd.xlane.f32.xlu0 %v1233
    %v1235 = vpop.xlane.xlu0 %1234
    %v1236 = vsel %vm976, %v1220, 0.0
    %1237 = vadd.xlane.f32.xlu0 %v1236
    %v1238 = vpop.xlane.xlu0 %1237
    %v1239 = vsel %vm976, %v1222, 0.0
    %1240 = vadd.xlane.f32.xlu0 %v1239
    %v1241 = vpop.xlane.xlu0 %1240
    %v1242 = vsel %vm976, %v1224, 0.0
    %1243 = vadd.xlane.f32.xlu0 %v1242
    %v1244 = vpop.xlane.xlu0 %1243
    %v1245 = vsel %vm976, %v1226, 0.0
    %1246 = vadd.xlane.f32.xlu0 %v1245
    %v1247 = vpop.xlane.xlu0 %1246
    %v1248 = vsel %vm976, %v1228, 0.0
    %1249 = vadd.xlane.f32.xlu0 %v1248
    %v1250 = vpop.xlane.xlu0 %1249
    %v1251 = vsel %vm976, %v1230, 0.0
    %1252 = vadd.xlane.f32.xlu0 %v1251
    %v1253 = vpop.xlane.xlu0 %1252
    %v1254 = vsel %vm976, %v1232, 0.0
    %1255 = vadd.xlane.f32.xlu0 %v1254
    %v1256 = vpop.xlane.xlu0 %1255
    %v1257 = vrcp.pop %v1235
    %v1258 = vrcp.pop %v1238
    %v1259 = vrcp.pop %v1241
    %v1260 = vrcp.pop %v1244
    %v1261 = vrcp.pop %v1247
    %v1262 = vrcp.pop %v1250
    %v1263 = vrcp.pop %v1253
    %v1264 = vrcp.pop %v1256
    %v1265 = vmul.f32 %v1218, %v1257
    %v1266 = vmul.f32 %v1220, %v1258
    %v1267 = vmul.f32 %v1222, %v1259
    %v1268 = vmul.f32 %v1224, %v1260
    %v1269 = vmul.f32 %v1226, %v1261
    %v1270 = vmul.f32 %v1228, %v1262
    %v1271 = vmul.f32 %v1230, %v1263
    %v1272 = vmul.f32 %v1232, %v1264
    %v1274 = vsel %vm976, %v1265, 0
    %1276 = vmatpush.msra.mxu0 0.0
    %1277 = vmatpush.msra.mxu0 0.0
    %1278 = vmatpush.msra.mxu0 0.0
    %1279 = vmatpush.msra.mxu0 0.0
    %1280 = vmatpush.msra.mxu0 0.0
    %1281 = vmatpush.msra.mxu0 0.0
    %1282 = vmatpush.msra.mxu0 0.0
    %1283 = vmatpush.msra.mxu0 0.0
    %1284 = vmatpush.msra.mxu0 0.0
    %1285 = vmatpush.msra.mxu0 0.0
    %1286 = vmatpush.msra.mxu0 0.0
    %1287 = vmatpush.msra.mxu0 0.0
    %1288 = vmatpush.msra.mxu0 0.0
    %1289 = vmatpush.msra.mxu0 0.0
    %1290 = vmatpush.msra.mxu0 0.0
    %1291 = vmatpush.msra.mxu0 %v907
    %1292 = vmatmul.f32.gmra.mxu0 %v1274
    %v1293 = vpop.f32.mrf.mxu0
    %v1294 = vadd.f32 0.0, %v1293
    %1295 = vdwg.mxu0
    %v1297 = vsel %vm976, %v1266, 0
    %1299 = vmatpush.msra.mxu0 0.0
    %1300 = vmatpush.msra.mxu0 0.0
    %1301 = vmatpush.msra.mxu0 0.0
    %1302 = vmatpush.msra.mxu0 0.0
    %1303 = vmatpush.msra.mxu0 0.0
    %1304 = vmatpush.msra.mxu0 0.0
    %1305 = vmatpush.msra.mxu0 0.0
    %1306 = vmatpush.msra.mxu0 0.0
    %1307 = vmatpush.msra.mxu0 0.0
    %1308 = vmatpush.msra.mxu0 0.0
    %1309 = vmatpush.msra.mxu0 0.0
    %1310 = vmatpush.msra.mxu0 0.0
    %1311 = vmatpush.msra.mxu0 0.0
    %1312 = vmatpush.msra.mxu0 0.0
    %1313 = vmatpush.msra.mxu0 0.0
    %1314 = vmatpush.msra.mxu0 %v961
    %1315 = vmatmul.f32.gmra.mxu0 %v1297
    %v1316 = vpop.f32.mrf.mxu0
    %v1317 = vadd.f32 0.0, %v1316
    %1318 = vdwg.mxu0
    %v1320 = vsel %vm976, %v1267, 0
    %1322 = vmatpush.msra.mxu0 0.0
    %1323 = vmatpush.msra.mxu0 0.0
    %1324 = vmatpush.msra.mxu0 0.0
    %1325 = vmatpush.msra.mxu0 0.0
    %1326 = vmatpush.msra.mxu0 0.0
    %1327 = vmatpush.msra.mxu0 0.0
    %1328 = vmatpush.msra.mxu0 0.0
    %1329 = vmatpush.msra.mxu0 0.0
    %1330 = vmatpush.msra.mxu0 0.0
    %1331 = vmatpush.msra.mxu0 0.0
    %1332 = vmatpush.msra.mxu0 0.0
    %1333 = vmatpush.msra.mxu0 0.0
    %1334 = vmatpush.msra.mxu0 0.0
    %1335 = vmatpush.msra.mxu0 0.0
    %1336 = vmatpush.msra.mxu0 0.0
    %1337 = vmatpush.msra.mxu0 %v909
    %1338 = vmatmul.f32.gmra.mxu0 %v1320
    %v1339 = vpop.f32.mrf.mxu0
    %v1340 = vadd.f32 0.0, %v1339
    %1341 = vdwg.mxu0
    %v1343 = vsel %vm976, %v1268, 0
    %1345 = vmatpush.msra.mxu0 0.0
    %1346 = vmatpush.msra.mxu0 0.0
    %1347 = vmatpush.msra.mxu0 0.0
    %1348 = vmatpush.msra.mxu0 0.0
    %1349 = vmatpush.msra.mxu0 0.0
    %1350 = vmatpush.msra.mxu0 0.0
    %1351 = vmatpush.msra.mxu0 0.0
    %1352 = vmatpush.msra.mxu0 0.0
    %1353 = vmatpush.msra.mxu0 0.0
    %1354 = vmatpush.msra.mxu0 0.0
    %1355 = vmatpush.msra.mxu0 0.0
    %1356 = vmatpush.msra.mxu0 0.0
    %1357 = vmatpush.msra.mxu0 0.0
    %1358 = vmatpush.msra.mxu0 0.0
    %1359 = vmatpush.msra.mxu0 0.0
    %1360 = vmatpush.msra.mxu0 %v963
    %1361 = vmatmul.f32.gmra.mxu0 %v1343
    %v1362 = vpop.f32.mrf.mxu0
    %v1363 = vadd.f32 0.0, %v1362
    %1364 = vdwg.mxu0
    %v1366 = vsel %vm976, %v1269, 0
    %1368 = vmatpush.msra.mxu0 0.0
    %1369 = vmatpush.msra.mxu0 0.0
    %1370 = vmatpush.msra.mxu0 0.0
    %1371 = vmatpush.msra.mxu0 0.0
    %1372 = vmatpush.msra.mxu0 0.0
    %1373 = vmatpush.msra.mxu0 0.0
    %1374 = vmatpush.msra.mxu0 0.0
    %1375 = vmatpush.msra.mxu0 0.0
    %1376 = vmatpush.msra.mxu0 0.0
    %1377 = vmatpush.msra.mxu0 0.0
    %1378 = vmatpush.msra.mxu0 0.0
    %1379 = vmatpush.msra.mxu0 0.0
    %1380 = vmatpush.msra.mxu0 0.0
    %1381 = vmatpush.msra.mxu0 0.0
    %1382 = vmatpush.msra.mxu0 0.0
    %1383 = vmatpush.msra.mxu0 %v911
    %1384 = vmatmul.f32.gmra.mxu0 %v1366
    %v1385 = vpop.f32.mrf.mxu0
    %v1386 = vadd.f32 0.0, %v1385
    %1387 = vdwg.mxu0
    %v1389 = vsel %vm976, %v1270, 0
    %1391 = vmatpush.msra.mxu0 0.0
    %1392 = vmatpush.msra.mxu0 0.0
    %1393 = vmatpush.msra.mxu0 0.0
    %1394 = vmatpush.msra.mxu0 0.0
    %1395 = vmatpush.msra.mxu0 0.0
    %1396 = vmatpush.msra.mxu0 0.0
    %1397 = vmatpush.msra.mxu0 0.0
    %1398 = vmatpush.msra.mxu0 0.0
    %1399 = vmatpush.msra.mxu0 0.0
    %1400 = vmatpush.msra.mxu0 0.0
    %1401 = vmatpush.msra.mxu0 0.0
    %1402 = vmatpush.msra.mxu0 0.0
    %1403 = vmatpush.msra.mxu0 0.0
    %1404 = vmatpush.msra.mxu0 0.0
    %1405 = vmatpush.msra.mxu0 0.0
    %1406 = vmatpush.msra.mxu0 %v965
    %1407 = vmatmul.f32.gmra.mxu0 %v1389
    %v1408 = vpop.f32.mrf.mxu0
    %v1409 = vadd.f32 0.0, %v1408
    %1410 = vdwg.mxu0
    %v1412 = vsel %vm976, %v1271, 0
    %1414 = vmatpush.msra.mxu0 0.0
    %1415 = vmatpush.msra.mxu0 0.0
    %1416 = vmatpush.msra.mxu0 0.0
    %1417 = vmatpush.msra.mxu0 0.0
    %1418 = vmatpush.msra.mxu0 0.0
    %1419 = vmatpush.msra.mxu0 0.0
    %1420 = vmatpush.msra.mxu0 0.0
    %1421 = vmatpush.msra.mxu0 0.0
    %1422 = vmatpush.msra.mxu0 0.0
    %1423 = vmatpush.msra.mxu0 0.0
    %1424 = vmatpush.msra.mxu0 0.0
    %1425 = vmatpush.msra.mxu0 0.0
    %1426 = vmatpush.msra.mxu0 0.0
    %1427 = vmatpush.msra.mxu0 0.0
    %1428 = vmatpush.msra.mxu0 0.0
    %1429 = vmatpush.msra.mxu0 %v913
    %1430 = vmatmul.f32.gmra.mxu0 %v1412
    %v1431 = vpop.f32.mrf.mxu0
    %v1432 = vadd.f32 0.0, %v1431
    %1433 = vdwg.mxu0
    %v1435 = vsel %vm976, %v1272, 0
    %1437 = vmatpush.msra.mxu0 0.0
    %1438 = vmatpush.msra.mxu0 0.0
    %1439 = vmatpush.msra.mxu0 0.0
    %1440 = vmatpush.msra.mxu0 0.0
    %1441 = vmatpush.msra.mxu0 0.0
    %1442 = vmatpush.msra.mxu0 0.0
    %1443 = vmatpush.msra.mxu0 0.0
    %1444 = vmatpush.msra.mxu0 0.0
    %1445 = vmatpush.msra.mxu0 0.0
    %1446 = vmatpush.msra.mxu0 0.0
    %1447 = vmatpush.msra.mxu0 0.0
    %1448 = vmatpush.msra.mxu0 0.0
    %1449 = vmatpush.msra.mxu0 0.0
    %1450 = vmatpush.msra.mxu0 0.0
    %1451 = vmatpush.msra.mxu0 0.0
    %1452 = vmatpush.msra.mxu0 %v967
    %1453 = vmatmul.f32.gmra.mxu0 %v1435
    %v1454 = vpop.f32.mrf.mxu0
    %v1455 = vadd.f32 0.0, %v1454
    %1456 = vdwg.mxu0
    %v1457 = vrot.slane %v1386, 4
    %v1458 = vsel %vm268, %v1457, %v1294
    %v1459 = vrot.slane %v1294, 4
    %v1460 = vsel %vm268, %v1386, %v1459
    %v1462 = vunpack.c.l.s4 1983009808
    %v1463 = vunpack.c.0.s8 %v1462
    %v1464 = vperm.slane %v1458, %v1463
    %v1466 = vunpack.c.l.s4 1983009808
    %v1467 = vunpack.c.0.s8 %v1466
    %v1468 = vperm.slane %v1460, %v1467
    %v1469 = vrot.slane %v1432, 4
    %v1470 = vsel %vm268, %v1469, %v1340
    %v1471 = vrot.slane %v1340, 4
    %v1472 = vsel %vm268, %v1432, %v1471
    %v1474 = vunpack.c.l.s4 1983009808
    %v1475 = vunpack.c.0.s8 %v1474
    %v1476 = vperm.slane %v1470, %v1475
    %v1478 = vunpack.c.l.s4 1983009808
    %v1479 = vunpack.c.0.s8 %v1478
    %v1480 = vperm.slane %v1472, %v1479
    %v1481 = vrot.slane %v1476, 4
    %v1482 = vsel %vm268, %v1481, %v1464
    %v1483 = vrot.slane %v1464, 4
    %v1484 = vsel %vm268, %v1476, %v1483
    %v1486 = vunpack.c.l.s4 1934713408
    %v1487 = vunpack.c.0.s8 %v1486
    %v1488 = vperm.slane %v1482, %v1487
    %v1490 = vunpack.c.l.s4 1934713408
    %v1491 = vunpack.c.0.s8 %v1490
    %v1492 = vperm.slane %v1484, %v1491
    %v1493 = vrot.slane %v1480, 4
    %v1494 = vsel %vm268, %v1493, %v1468
    %v1495 = vrot.slane %v1468, 4
    %v1496 = vsel %vm268, %v1480, %v1495
    %v1498 = vunpack.c.l.s4 1934713408
    %v1499 = vunpack.c.0.s8 %v1498
    %v1500 = vperm.slane %v1494, %v1499
    %v1502 = vunpack.c.l.s4 1934713408
    %v1503 = vunpack.c.0.s8 %v1502
    %v1504 = vperm.slane %v1496, %v1503
    %v1505 = vrot.slane %v1488, 4
    %v1506 = vsel %vm268, 0.0, %v1505
    %v1507 = vrot.slane %v1492, 4
    %v1508 = vsel %vm268, 0.0, %v1507
    %v1509 = vrot.slane %v1500, 4
    %v1510 = vsel %vm268, 0.0, %v1509
    %v1511 = vrot.slane %v1504, 4
    %v1512 = vsel %vm268, 0.0, %v1511
    %v1513 = vrot.slane %v1409, 4
    %v1514 = vsel %vm268, %v1513, %v1317
    %v1515 = vrot.slane %v1317, 4
    %v1516 = vsel %vm268, %v1409, %v1515
    %v1518 = vunpack.c.l.s4 1983009808
    %v1519 = vunpack.c.0.s8 %v1518
    %v1520 = vperm.slane %v1514, %v1519
    %v1522 = vunpack.c.l.s4 1983009808
    %v1523 = vunpack.c.0.s8 %v1522
    %v1524 = vperm.slane %v1516, %v1523
    %v1525 = vrot.slane %v1455, 4
    %v1526 = vsel %vm268, %v1525, %v1363
    %v1527 = vrot.slane %v1363, 4
    %v1528 = vsel %vm268, %v1455, %v1527
    %v1530 = vunpack.c.l.s4 1983009808
    %v1531 = vunpack.c.0.s8 %v1530
    %v1532 = vperm.slane %v1526, %v1531
    %v1534 = vunpack.c.l.s4 1983009808
    %v1535 = vunpack.c.0.s8 %v1534
    %v1536 = vperm.slane %v1528, %v1535
    %v1537 = vrot.slane %v1532, 4
    %v1538 = vsel %vm268, %v1537, %v1520
    %v1539 = vrot.slane %v1520, 4
    %v1540 = vsel %vm268, %v1532, %v1539
    %v1542 = vunpack.c.l.s4 1934713408
    %v1543 = vunpack.c.0.s8 %v1542
    %v1544 = vperm.slane %v1538, %v1543
    %v1546 = vunpack.c.l.s4 1934713408
    %v1547 = vunpack.c.0.s8 %v1546
    %v1548 = vperm.slane %v1540, %v1547
    %v1549 = vrot.slane %v1536, 4
    %v1550 = vsel %vm268, %v1549, %v1524
    %v1551 = vrot.slane %v1524, 4
    %v1552 = vsel %vm268, %v1536, %v1551
    %v1554 = vunpack.c.l.s4 1934713408
    %v1555 = vunpack.c.0.s8 %v1554
    %v1556 = vperm.slane %v1550, %v1555
    %v1558 = vunpack.c.l.s4 1934713408
    %v1559 = vunpack.c.0.s8 %v1558
    %v1560 = vperm.slane %v1552, %v1559
    %v1561 = vrot.slane %v1544, 4
    %v1562 = vsel %vm268, 0.0, %v1561
    %v1563 = vrot.slane %v1548, 4
    %v1564 = vsel %vm268, 0.0, %v1563
    %v1565 = vrot.slane %v1556, 4
    %v1566 = vsel %vm268, 0.0, %v1565
    %v1567 = vrot.slane %v1560, 4
    %v1568 = vsel %vm268, 0.0, %v1567
    %v1569 = vsel %vm268, %v1507, %v1488
    %v1571 = vunpack.c.l.s4 1983009808
    %v1572 = vunpack.c.0.s8 %v1571
    %v1573 = vperm.slane %v1569, %v1572
    %v1574 = vrot.slane %v1508, 4
    %v1575 = vsel %vm268, %v1574, %v1506
    %v1577 = vunpack.c.l.s4 1983009808
    %v1578 = vunpack.c.0.s8 %v1577
    %v1579 = vperm.slane %v1575, %v1578
    %v1580 = vsel %vm268, %v1511, %v1500
    %v1582 = vunpack.c.l.s4 1983009808
    %v1583 = vunpack.c.0.s8 %v1582
    %v1584 = vperm.slane %v1580, %v1583
    %v1585 = vrot.slane %v1512, 4
    %v1586 = vsel %vm268, %v1585, %v1510
    %v1588 = vunpack.c.l.s4 1983009808
    %v1589 = vunpack.c.0.s8 %v1588
    %v1590 = vperm.slane %v1586, %v1589
    %v1591 = vrot.slane %v1579, 4
    %v1592 = vsel %vm268, %v1591, %v1573
    %v1593 = vrot.slane %v1573, 4
    %v1594 = vsel %vm268, %v1579, %v1593
    %v1596 = vunpack.c.l.s4 1934713408
    %v1597 = vunpack.c.0.s8 %v1596
    %v1598 = vperm.slane %v1592, %v1597
    %v1600 = vunpack.c.l.s4 1934713408
    %v1601 = vunpack.c.0.s8 %v1600
    %v1602 = vperm.slane %v1594, %v1601
    %v1603 = vrot.slane %v1590, 4
    %v1604 = vsel %vm268, %v1603, %v1584
    %v1605 = vrot.slane %v1584, 4
    %v1606 = vsel %vm268, %v1590, %v1605
    %v1608 = vunpack.c.l.s4 1934713408
    %v1609 = vunpack.c.0.s8 %v1608
    %v1610 = vperm.slane %v1604, %v1609
    %v1612 = vunpack.c.l.s4 1934713408
    %v1613 = vunpack.c.0.s8 %v1612
    %v1614 = vperm.slane %v1606, %v1613
    %v1615 = vrot.slane %v1610, 4
    %v1616 = vsel %vm268, %v1615, %v1598
    %v1617 = vrot.slane %v1598, 4
    %v1618 = vsel %vm268, %v1610, %v1617
    %v1619 = vrot.slane %v1614, 4
    %v1620 = vsel %vm268, %v1619, %v1602
    %v1621 = vrot.slane %v1602, 4
    %v1622 = vsel %vm268, %v1614, %v1621
    %v1623 = vsel %vm268, %v1563, %v1544
    %v1625 = vunpack.c.l.s4 1983009808
    %v1626 = vunpack.c.0.s8 %v1625
    %v1627 = vperm.slane %v1623, %v1626
    %v1628 = vrot.slane %v1564, 4
    %v1629 = vsel %vm268, %v1628, %v1562
    %v1631 = vunpack.c.l.s4 1983009808
    %v1632 = vunpack.c.0.s8 %v1631
    %v1633 = vperm.slane %v1629, %v1632
    %v1634 = vsel %vm268, %v1567, %v1556
    %v1636 = vunpack.c.l.s4 1983009808
    %v1637 = vunpack.c.0.s8 %v1636
    %v1638 = vperm.slane %v1634, %v1637
    %v1639 = vrot.slane %v1568, 4
    %v1640 = vsel %vm268, %v1639, %v1566
    %v1642 = vunpack.c.l.s4 1983009808
    %v1643 = vunpack.c.0.s8 %v1642
    %v1644 = vperm.slane %v1640, %v1643
    %v1645 = vrot.slane %v1633, 4
    %v1646 = vsel %vm268, %v1645, %v1627
    %v1647 = vrot.slane %v1627, 4
    %v1648 = vsel %vm268, %v1633, %v1647
    %v1650 = vunpack.c.l.s4 1934713408
    %v1651 = vunpack.c.0.s8 %v1650
    %v1652 = vperm.slane %v1646, %v1651
    %v1654 = vunpack.c.l.s4 1934713408
    %v1655 = vunpack.c.0.s8 %v1654
    %v1656 = vperm.slane %v1648, %v1655
    %v1657 = vrot.slane %v1644, 4
    %v1658 = vsel %vm268, %v1657, %v1638
    %v1659 = vrot.slane %v1638, 4
    %v1660 = vsel %vm268, %v1644, %v1659
    %v1662 = vunpack.c.l.s4 1934713408
    %v1663 = vunpack.c.0.s8 %v1662
    %v1664 = vperm.slane %v1658, %v1663
    %v1666 = vunpack.c.l.s4 1934713408
    %v1667 = vunpack.c.0.s8 %v1666
    %v1668 = vperm.slane %v1660, %v1667
    %v1669 = vrot.slane %v1664, 4
    %v1670 = vsel %vm268, %v1669, %v1652
    %v1671 = vrot.slane %v1652, 4
    %v1672 = vsel %vm268, %v1664, %v1671
    %v1673 = vrot.slane %v1668, 4
    %v1674 = vsel %vm268, %v1673, %v1656
    %v1675 = vrot.slane %v1656, 4
    %v1676 = vsel %vm268, %v1668, %v1675
    %1679 = vrot.lane.b32.xlu0 %v1618, 8
    %v1680 = vpop.permute.xlu0 %1679
    %1681 = vrot.lane.b32.xlu0 %v1672, 8
    %v1682 = vpop.permute.xlu0 %1681
    %1687 = vrot.lane.b32.xlu0 %v1620, 16
    %v1688 = vpop.permute.xlu0 %1687
    %1689 = vrot.lane.b32.xlu0 %v1674, 16
    %v1690 = vpop.permute.xlu0 %1689
    %1695 = vrot.lane.b32.xlu0 %v1622, 24
    %v1696 = vpop.permute.xlu0 %1695
    %1697 = vrot.lane.b32.xlu0 %v1676, 24
    %v1698 = vpop.permute.xlu0 %1697
    %v1701 = vsel %vm976, %v1616, %v1680
    %v1702 = vsel %vm976, %v1670, %v1682
    %vm1703 = vcmask 130048
    %v1704 = vsel %vm1703, %v1701, %v1688
    %v1705 = vsel %vm1703, %v1702, %v1690
    %vm1706 = vcmask 195584
    %v1707 = vsel %vm1706, %v1704, %v1696
    %v1708 = vsel %vm1706, %v1705, %v1698
    %v1709 = vld [vmem:[#allocation11] sm:$0xff]
    %v1710 = vld [vmem:[#allocation11 + $0x8] sm:$0xff]
    %v1711 = vld [vmem:[#allocation11 + $0x10] sm:$0xff]
    %v1712 = vld [vmem:[#allocation11 + $0x18] sm:$0xff]
    %v1714 = vsel %vm131, %v1707, 0
    %v1717 = vsel %vm131, %v1708, 0
    %1719 = vmatpush.msra.mxu0 0.0
    %1720 = vmatpush.msra.mxu0 0.0
    %1721 = vmatpush.msra.mxu0 0.0
    %1722 = vmatpush.msra.mxu0 0.0
    %1723 = vmatpush.msra.mxu0 0.0
    %1724 = vmatpush.msra.mxu0 0.0
    %1725 = vmatpush.msra.mxu0 0.0
    %1726 = vmatpush.msra.mxu0 0.0
    %1727 = vmatpush.msra.mxu0 0.0
    %1728 = vmatpush.msra.mxu0 0.0
    %1729 = vmatpush.msra.mxu0 0.0
    %1730 = vmatpush.msra.mxu0 0.0
    %1731 = vmatpush.msra.mxu0 %v1712
    %1732 = vmatpush.msra.mxu0 %v1711
    %1733 = vmatpush.msra.mxu0 %v1710
    %1734 = vmatpush.msra.mxu0 %v1709
    %1735 = vmatmul.f32.gmra.mxu0 %v1714
    %v1736 = vpop.f32.mrf.mxu0
    %v1737 = vadd.f32 %v121, %v1736
    %1738 = vmatmul.f32.gmra.mxu0 %v1717
    %v1739 = vpop.f32.mrf.mxu0
    %v1740 = vadd.f32 %v122, %v1739
    %1741 = vdwg.mxu0
    %v1742 = vsel %vm131, %v1737, 0.0
    %1743 = vadd.xlane.f32.xlu0 %v1742
    %v1744 = vpop.xlane.xlu0 %1743
    %v1745 = vsel %vm131, %v1740, 0.0
    %1746 = vadd.xlane.f32.xlu0 %v1745
    %v1747 = vpop.xlane.xlu0 %1746
    %v1748 = vrcp.pop 32.0
    %v1749 = vmul.f32 32.0, %v1748
    %v1750 = vsub.f32 1.0, %v1749
    %v1751 = vmul.f32 %v1748, %v1750
    %v1752 = vadd.f32 %v1748, %v1751
    %vm1753 = vweird.f32 %v1748
    %v1754 = vsel %vm1753, %v1748, %v1752
    %v1755 = vmul.f32 %v1744, %v1754
    %v1756 = vmul.f32 %v1747, %v1754
    %v1757 = vsub.f32 %v1737, %v1755
    %v1758 = vsub.f32 %v1740, %v1756
    %v1759 = vmul.f32 %v1757, %v1757
    %v1760 = vmul.f32 %v1758, %v1758
    %v1761 = vsel %vm131, %v1759, 0.0
    %1762 = vadd.xlane.f32.xlu0 %v1761
    %v1763 = vpop.xlane.xlu0 %1762
    %v1764 = vsel %vm131, %v1760, 0.0
    %1765 = vadd.xlane.f32.xlu0 %v1764
    %v1766 = vpop.xlane.xlu0 %1765
    %v1767 = vmul.f32 %v1763, %v1754
    %v1768 = vmul.f32 %v1766, %v1754
    %v1769 = vadd.f32 %v1767, 1e-06
    %v1770 = vadd.f32 %v1768, 1e-06
    %v1771 = vrsqrt.pop %v1769
    %v1772 = vmul.f32 %v1771, %v1769
    %v1773 = vmul.f32 %v1772, %v1771
    %v1774 = vmul.f32 0.5, %v1773
    %v1775 = vsub.f32 1.5, %v1774
    %v1776 = vmul.f32 %v1771, %v1775
    %vm1777 = vweird.f32 %v1769
    %vm1778 = vweird.f32 %v1771
    %vm1779 = vmor %vm1777, %vm1778
    %v1780 = vsel %vm1779, %v1771, %v1776
    %v1781 = vrsqrt.pop %v1770
    %v1782 = vmul.f32 %v1781, %v1770
    %v1783 = vmul.f32 %v1782, %v1781
    %v1784 = vmul.f32 0.5, %v1783
    %v1785 = vsub.f32 1.5, %v1784
    %v1786 = vmul.f32 %v1781, %v1785
    %vm1787 = vweird.f32 %v1770
    %vm1788 = vweird.f32 %v1781
    %vm1789 = vmor %vm1787, %vm1788
    %v1790 = vsel %vm1789, %v1781, %v1786
    %v1791 = vmul.f32 %v1757, %v1780
    %v1792 = vmul.f32 %v1758, %v1790
    %v1793 = vld [vmem:[%s6] sm:$0x1]
    %v1794 = vperm.slane %v1793, 0
    %v1795 = vmul.f32 %v1791, %v1794
    %v1796 = vmul.f32 %v1792, %v1794
    %v1797 = vld [vmem:[%s6 + $0x1] sm:$0x1]
    %v1798 = vperm.slane %v1797, 0
    %v1799 = vadd.f32 %v1795, %v1798
    %v1800 = vadd.f32 %v1796, %v1798
    %1801 = vst.msk [vmem:[#allocation13] sm:$0xff] %vm131, %v1799
    %1802 = vst.msk [vmem:[#allocation13 + $0x8] sm:$0xff] %vm131, %v1800
    // Predicated region
    $region54: #{tpu_custom_call.1} parent=1 // pred_check
      _
    $region55: #{tpu_custom_call.1} parent=1 // pred_check_branch
      %1804 = sbr.rel (0) target = $region57
    $region56: #{tpu_custom_call.1} parent=1 // pred_region
      %1806 = vsyncadd [#allocation4], 0
      %s1807 = sshll.u32 [#allocation13], 4
      %s1808 = int_to_ptr.vmem [resolvable:$true] %s1807
      %s1809 = sshll.u32 %s7, 4
      %s1810 = int_to_ptr.hbm [resolvable:$true] %s1809
      %1815 = dma.vmem_to_hbm [thread:$0]  %s1808, 256, %s1810, [#allocation4], 128, 128, 8
    $region57: #{tpu_custom_call.1} parent=1 // pred_fallthru
      _
    // Predicated region
    $region58: #{tpu_custom_call.1} parent=1 // pred_check
      _
    $region59: #{tpu_custom_call.1} parent=1 // pred_check_branch
      %1817 = sbr.rel (0) target = $region61
    $region60: #{tpu_custom_call.1} parent=1 // pred_region
      %1819 = dma.done [#allocation4], 256
    $region61: #{tpu_custom_call.1} parent=1 // pred_fallthru
      _
    %1820 = vsyncpa [#allocation3], 1
    %1821 = vsyncpa [#allocation6], 1
    %1822 = vsyncpa [#allocation9], 1
    %1823 = vsyncpa [#allocation12], 1
    %1824 = vsyncpa [#allocation4], 1

</llo_original>
